<compile_context>
chip_gen: v7x
topology: tpu7x:2x2x1
jax: 0.10.0
libtpu: 0.0.40
codegen_flags: <defaults>
</compile_context>

<pallas_src>
import math

import jax
import jax.numpy as jnp
from jax import lax
from jax.experimental import pallas as pl
from jax.experimental.pallas import tpu as pltpu


# --------------------------------------------------------------------------
# Fused kernel: hoisted input projection + skewed 2-layer LSTM + final Linear
# Gate order matches PyTorch (i, f, g, o); columns interleaved per gate as
# [i0 i1 | f0 f1 | g0 g1 | o0 o1] so both layers share each nonlinearity call.
# --------------------------------------------------------------------------
def _sar_encoder_kernel(x_ref, wih0_ref, bfull_ref, wblk_ref, linw_hbm,
                        linb_ref, out_ref,
                        gfull_ref, seq_ref, linw_vmem, dma_sem):
    # x_ref:     (N, C)   f32  -- max over H of width column W-1
    # wih0_ref:  (C, 8E)  bf16 -- layer-0 input weights, zero in layer-1 cols
    # bfull_ref: (1, 8E)  f32  -- interleaved (bih0+bhh0) / (bih1+bhh1)
    # wblk_ref:  (2E, 8E) bf16 -- block recurrent weight [[Whh0,Wih1],[0,Whh1]]
    # linw_hbm:  (E, E)   bf16 -- final Linear weight, left in HBM (late use)
    # gfull_ref: (N, 8E)  f32 scratch -- hoisted input projection (+ biases)
    # seq_ref:   (N, E)   bf16 scratch -- collected layer-1 outputs
    N = x_ref.shape[0]
    E = out_ref.shape[1]

    # Kick off the late-use Linear-weight DMA; hide it behind the recurrence.
    lin_cp = pltpu.make_async_copy(linw_hbm, linw_vmem, dma_sem)
    lin_cp.start()

    # Hoisted layer-0 input projection for ALL time steps (one MXU matmul),
    # plus the interleaved per-gate biases of both layers.
    gfull_ref[...] = (jnp.dot(x_ref[...].astype(jnp.bfloat16), wih0_ref[...],
                              preferred_element_type=jnp.float32)
                      + bfull_ref[...])

    wblk = wblk_ref[...]                        # hoist weight load out of loop

    def update(g, h, c):
        # g: (1, 8E) = [i0 i1 | f0 f1 | g0 g1 | o0 o1]; h, c: (1, 2E) [l0|l1]
        i = jax.nn.sigmoid(g[:, 0 * E:2 * E])
        f = jax.nn.sigmoid(g[:, 2 * E:4 * E])
        gg = jnp.tanh(g[:, 4 * E:6 * E])
        o = jax.nn.sigmoid(g[:, 6 * E:8 * E])
        c_new = f * c + i * gg
        h_new = o * jnp.tanh(c_new)
        return h_new, c_new

    zero2 = jnp.zeros((1, 2 * E), jnp.float32)
    zeroE = jnp.zeros((1, E), jnp.float32)

    # ---- peeled warm-up: layer-0 step 0 only (h = c = 0 => recurrent dot = 0)
    g = gfull_ref[pl.ds(0, 1), :]
    h, c = update(g, zero2, zero2)
    h = jnp.concatenate([h[:, :E], zeroE], axis=1)   # discard bogus layer-1
    c = jnp.concatenate([c[:, :E], zeroE], axis=1)

    # ---- skewed main loop: iteration s = layer-0 step s + layer-1 step s-1,
    # both served by ONE (1,2E)x(2E,8E) MXU dot.
    def step(s, carry):
        h, c = carry
        g = (jnp.dot(h.astype(jnp.bfloat16), wblk,
                     preferred_element_type=jnp.float32)
             + gfull_ref[pl.ds(s, 1), :])
        h, c = update(g, h, c)
        # layer-1 output of step s-1 (W-1 "batch" row of holistic_feat)
        seq_ref[pl.ds(s - 1, 1), :] = h[:, E:2 * E].astype(jnp.bfloat16)
        return h, c

    num_steps = N - 1
    unroll = True if num_steps <= 8 else 8          # bounded unroll for long N
    h, c = lax.fori_loop(1, N, step, (h, c), unroll=unroll)

    # ---- peeled tail: layer-1 step N-1 (layer-0 half of the update is unused)
    g = (jnp.dot(h.astype(jnp.bfloat16), wblk,
                 preferred_element_type=jnp.float32)
         + gfull_ref[pl.ds(N - 1, 1), :])
    h, _ = update(g, h, c)
    seq_ref[pl.ds(N - 1, 1), :] = h[:, E:2 * E].astype(jnp.bfloat16)

    # ---- final nn.Linear: wait on the overlapped weight DMA only now.
    lin_cp.wait()
    out_ref[...] = (jnp.dot(seq_ref[...], linw_vmem[...],
                            preferred_element_type=jnp.float32)
                    + linb_ref[...])


def _nbytes(shape, dtype):
    return math.prod(shape) * jnp.dtype(dtype).itemsize


def sar_encoder_forward(feat_nchw, kparams):
    N, C, H, W = feat_nchw.shape
    E = kparams["linb"].shape[1]

    # Only width column W-1 ever reaches the output; max-pool over H is folded
    # into the wrapper so the kernel gets a tiny (N, C) tensor.
    x_sel = jnp.max(feat_nchw[:, :, :, W - 1], axis=2)

    vmem = pl.BlockSpec(memory_space=pltpu.MemorySpace.VMEM)
    hbm = pl.BlockSpec(memory_space=pl.ANY)

    in_bytes = (_nbytes((N, C), jnp.float32)
                + _nbytes((C, 8 * E), jnp.bfloat16)
                + _nbytes((1, 8 * E), jnp.float32)
                + _nbytes((2 * E, 8 * E), jnp.bfloat16)
                + _nbytes((E, E), jnp.bfloat16)
                + _nbytes((1, E), jnp.float32))
    scratch_bytes = (_nbytes((N, 8 * E), jnp.float32)
                     + _nbytes((N, E), jnp.bfloat16)
                     + _nbytes((E, E), jnp.bfloat16))
    out_bytes = _nbytes((N, E), jnp.float32)
    vmem_limit = min(2 * (in_bytes + scratch_bytes + out_bytes) + (8 << 20),
                     100 << 20)

    cost = pl.CostEstimate(
        flops=2 * N * C * 8 * E + 2 * (N + 1) * 2 * E * 8 * E + 2 * N * E * E,
        transcendentals=12 * (N + 1) * E,
        bytes_accessed=in_bytes + out_bytes)

    out = pl.pallas_call(
        _sar_encoder_kernel,
        out_shape=jax.ShapeDtypeStruct((N, E), jnp.float32),
        in_specs=[vmem, vmem, vmem, vmem, hbm, vmem],
        out_specs=vmem,
        scratch_shapes=[
            pltpu.VMEM((N, 8 * E), jnp.float32),    # hoisted input projection
            pltpu.VMEM((N, E), jnp.bfloat16),       # collected valid_hf rows
            pltpu.VMEM((E, E), jnp.bfloat16),       # Linear weight landing buf
            pltpu.SemaphoreType.DMA(()),
        ],
        compiler_params=pltpu.CompilerParams(vmem_limit_bytes=int(vmem_limit)),
        cost_estimate=cost,
    )(x_sel,
      kparams["wih0_block"], kparams["bias_full"], kparams["w_block"],
      kparams["linw_t"], kparams["linb"])
    return out


# --------------------------------------------------------------------------
# Deterministic parameter init (PyTorch-style uniform(-1/sqrt(E), 1/sqrt(E)))
# and kernel-side re-packing (interleaved per-gate column layout).
# --------------------------------------------------------------------------
def init_params(key, d_model, d_enc):
    E = d_enc
    k = 1.0 / math.sqrt(E)
    keys = jax.random.split(key, 10)

    def u(kk, shape):
        return jax.random.uniform(kk, shape, jnp.float32, -k, k)

    wih0 = u(keys[0], (4 * E, d_model))
    whh0 = u(keys[1], (4 * E, E))
    bih0 = u(keys[2], (4 * E,))
    bhh0 = u(keys[3], (4 * E,))
    wih1 = u(keys[4], (4 * E, E))
    whh1 = u(keys[5], (4 * E, E))
    bih1 = u(keys[6], (4 * E,))
    bhh1 = u(keys[7], (4 * E,))
    linw = u(keys[8], (E, E))
    linb = u(keys[9], (E,))

    raw = dict(wih0=wih0, whh0=whh0, bih0=bih0, bhh0=bhh0,
               wih1=wih1, whh1=whh1, bih1=bih1, bhh1=bhh1,
               linw=linw, linb=linb)

    def interleave(a4, b4):
        # (rows, 4E) x2 -> (rows, 8E) with per-gate column order [g_l0 | g_l1].
        parts = []
        for g in range(4):
            parts.append(a4[:, g * E:(g + 1) * E])
            parts.append(b4[:, g * E:(g + 1) * E])
        return jnp.concatenate(parts, axis=1)

    W0, H0 = wih0.T, whh0.T                   # (C,4E), (E,4E)
    W1, H1 = wih1.T, whh1.T                   # (E,4E), (E,4E)

    wih0_block = interleave(W0, jnp.zeros((d_model, 4 * E), jnp.float32))
    w_block = jnp.concatenate(
        [interleave(H0, W1),
         interleave(jnp.zeros((E, 4 * E), jnp.float32), H1)], axis=0)
    bias_full = interleave((bih0 + bhh0)[None, :], (bih1 + bhh1)[None, :])

    kparams = dict(
        wih0_block=wih0_block.astype(jnp.bfloat16),
        bias_full=bias_full,                                   # f32
        w_block=w_block.astype(jnp.bfloat16),
        linw_t=linw.T.astype(jnp.bfloat16),
        linb=linb[None, :],                                    # f32
    )
    return raw, kparams


# --------------------------------------------------------------------------
# Pure-JAX f32 reference mirroring the PyTorch forward literally (full-width
# LSTM over all W columns), validating the W-1-only + skewed restructuring.
# --------------------------------------------------------------------------
def ref_forward(feat_nchw, raw):
    feat_v = jnp.max(feat_nchw, axis=2)            # max_pool2d((H,1)).squeeze(2)
    x = jnp.transpose(feat_v, (0, 2, 1))           # (N, W, C): time=N, batch=W

    def lstm_layer(xs, wih, whh, bih, bhh):
        T, B, _ = xs.shape
        E = whh.shape[1]

        def step(carry, xt):
            h, c = carry
            g = xt @ wih.T + h @ whh.T + bih + bhh
            i = jax.nn.sigmoid(g[:, :E])
            f = jax.nn.sigmoid(g[:, E:2 * E])
            gg = jnp.tanh(g[:, 2 * E:3 * E])
            o = jax.nn.sigmoid(g[:, 3 * E:])
            c = f * c + i * gg
            h = o * jnp.tanh(c)
            return (h, c), h

        init = (jnp.zeros((B, E), jnp.float32), jnp.zeros((B, E), jnp.float32))
        _, ys = lax.scan(step, init, xs)
        return ys

    y0 = lstm_layer(x, raw["wih0"], raw["whh0"], raw["bih0"], raw["bhh0"])
    y1 = lstm_layer(y0, raw["wih1"], raw["whh1"], raw["bih1"], raw["bhh1"])
    valid_hf = y1[:, -1, :]
    return valid_hf @ raw["linw"].T + raw["linb"]


if __name__ == "__main__":
    # Small but lane-aligned shapes (E multiple of 128 keeps gate slices and
    # the [h0|h1] state layout aligned, per the review).
    N, d_model, H, W = 4, 128, 8, 8
    d_enc = 128

    key = jax.random.PRNGKey(0)
    k_feat, k_params = jax.random.split(key)
    feat = jax.random.normal(k_feat, (N, d_model, H, W), jnp.float32)
    raw, kparams = init_params(k_params, d_model, d_enc)

    out = jax.block_until_ready(sar_encoder_forward(feat, kparams))
    ref = ref_forward(feat, raw)

    assert out.shape == (N, d_enc), out.shape
    # Tolerance relaxed vs the pure-f32 reference because matmul operands are
    # bf16 (state, gates and accumulation stay f32).
    assert jnp.allclose(out, ref, atol=5e-2, rtol=5e-2), (out, ref)

    print("KERNEL_OK")
</pallas_src>

<mosaic_0001>
module attributes {stable_mosaic.version = 11 : i64} {
  func.func @_sar_encoder_kernel(%arg0: memref<4x128xf32, #tpu.memory_space<vmem>>, %arg1: memref<128x1024xbf16, #tpu.memory_space<vmem>>, %arg2: memref<1x1024xf32, #tpu.memory_space<vmem>>, %arg3: memref<256x1024xbf16, #tpu.memory_space<vmem>>, %arg4: memref<128x128xbf16, #tpu.memory_space<any>>, %arg5: memref<1x128xf32, #tpu.memory_space<vmem>>, %arg6: memref<4x128xf32, #tpu.memory_space<vmem>>, %arg7: memref<4x1024xf32, #tpu.memory_space<vmem>>, %arg8: memref<4x128xbf16, #tpu.memory_space<vmem>>, %arg9: memref<128x128xbf16, #tpu.memory_space<vmem>>, %arg10: memref<!tpu.dma_semaphore, #tpu.memory_space<semaphore_mem>>) attributes {dimension_semantics = [], scalar_prefetch = 0 : i64, scratch_operands = 4 : i64, tpu.core_type = #tpu.core_type<tc>} {
    tpu.enqueue_dma source(%arg4 : memref<128x128xbf16, #tpu.memory_space<any>>) target(%arg9 : memref<128x128xbf16, #tpu.memory_space<vmem>>) target_semaphore(%arg10 : memref<!tpu.dma_semaphore, #tpu.memory_space<semaphore_mem>>)
    %c0 = arith.constant 0 : index
    %c0_0 = arith.constant 0 : index
    %0 = vector.load %arg0[%c0, %c0_0] : memref<4x128xf32, #tpu.memory_space<vmem>>, vector<4x128xf32>
    %1 = arith.truncf %0 : vector<4x128xf32> to vector<4x128xbf16>
    %c0_1 = arith.constant 0 : index
    %c0_2 = arith.constant 0 : index
    %2 = vector.load %arg1[%c0_1, %c0_2] : memref<128x1024xbf16, #tpu.memory_space<vmem>>, vector<128x1024xbf16>
    %cst = arith.constant dense<0.000000e+00> : vector<4x1024xf32>
    %3 = tpu.matmul %1, %2, %cst {dimension_numbers = #tpu.dot_dimension_numbers<[1], [0], [0], [1], [0, 0, 1, 1], [], []>} : vector<4x128xbf16>, vector<128x1024xbf16>, vector<4x1024xf32> -> vector<4x1024xf32>
    %c0_3 = arith.constant 0 : index
    %c0_4 = arith.constant 0 : index
    %4 = vector.load %arg2[%c0_3, %c0_4] : memref<1x1024xf32, #tpu.memory_space<vmem>>, vector<1x1024xf32>
    %5 = vector.broadcast %4 : vector<1x1024xf32> to vector<4x1024xf32>
    %6 = arith.addf %3, %5 : vector<4x1024xf32>
    %c0_5 = arith.constant 0 : index
    %c0_6 = arith.constant 0 : index
    %7 = vector.load %arg7[%c0_5, %c0_6] : memref<4x1024xf32, #tpu.memory_space<vmem>>, vector<4x1024xf32>
    tpu.vector_store %arg7[%c0_5, %c0_6], %6 {strides = array<i32>} : memref<4x1024xf32, #tpu.memory_space<vmem>>, vector<4x1024xf32>,
    %c0_7 = arith.constant 0 : index
    %c0_8 = arith.constant 0 : index
    %8 = vector.load %arg3[%c0_7, %c0_8] : memref<256x1024xbf16, #tpu.memory_space<vmem>>, vector<256x1024xbf16>
    %cst_9 = arith.constant 0.000000e+00 : f32
    %9 = vector.broadcast %cst_9 : f32 to vector<1x256xf32>
    %cst_10 = arith.constant 0.000000e+00 : f32
    %10 = vector.broadcast %cst_10 : f32 to vector<1x128xf32>
    %c0_11 = arith.constant 0 : index
    %c0_12 = arith.constant 0 : index
    %11 = vector.load %arg7[%c0_11, %c0_12] : memref<4x1024xf32, #tpu.memory_space<vmem>>, vector<1x1024xf32>
    %12 = vector.extract_strided_slice %11 {offsets = [0, 0], sizes = [1, 256], strides = [1, 1]} : vector<1x1024xf32> to vector<1x256xf32>
    %13 = arith.negf %12 : vector<1x256xf32>
    %14 = math.exp %13 : vector<1x256xf32>
    %cst_13 = arith.constant 1.000000e+00 : f32
    %15 = vector.broadcast %cst_13 : f32 to vector<1x256xf32>
    %16 = arith.addf %15, %14 : vector<1x256xf32>
    %17 = arith.divf %15, %16 : vector<1x256xf32>
    %18 = vector.extract_strided_slice %11 {offsets = [0, 256], sizes = [1, 256], strides = [1, 1]} : vector<1x1024xf32> to vector<1x256xf32>
    %19 = arith.negf %18 : vector<1x256xf32>
    %20 = math.exp %19 : vector<1x256xf32>
    %cst_14 = arith.constant 1.000000e+00 : f32
    %21 = vector.broadcast %cst_14 : f32 to vector<1x256xf32>
    %22 = arith.addf %21, %20 : vector<1x256xf32>
    %23 = arith.divf %21, %22 : vector<1x256xf32>
    %24 = vector.extract_strided_slice %11 {offsets = [0, 512], sizes = [1, 256], strides = [1, 1]} : vector<1x1024xf32> to vector<1x256xf32>
    %25 = math.tanh %24 : vector<1x256xf32>
    %26 = vector.extract_strided_slice %11 {offsets = [0, 768], sizes = [1, 256], strides = [1, 1]} : vector<1x1024xf32> to vector<1x256xf32>
    %27 = arith.negf %26 : vector<1x256xf32>
    %28 = math.exp %27 : vector<1x256xf32>
    %cst_15 = arith.constant 1.000000e+00 : f32
    %29 = vector.broadcast %cst_15 : f32 to vector<1x256xf32>
    %30 = arith.addf %29, %28 : vector<1x256xf32>
    %31 = arith.divf %29, %30 : vector<1x256xf32>
    %32 = arith.mulf %23, %9 : vector<1x256xf32>
    %33 = arith.mulf %17, %25 : vector<1x256xf32>
    %34 = arith.addf %32, %33 : vector<1x256xf32>
    %35 = math.tanh %34 : vector<1x256xf32>
    %36 = arith.mulf %31, %35 : vector<1x256xf32>
    %37 = vector.extract_strided_slice %36 {offsets = [0, 0], sizes = [1, 128], strides = [1, 1]} : vector<1x256xf32> to vector<1x128xf32>
    %38 = tpu.concatenate %37, %10 in 1 : vector<1x128xf32>, vector<1x128xf32> -> vector<1x256xf32>
    %39 = vector.extract_strided_slice %34 {offsets = [0, 0], sizes = [1, 128], strides = [1, 1]} : vector<1x256xf32> to vector<1x128xf32>
    %40 = tpu.concatenate %39, %10 in 1 : vector<1x128xf32>, vector<1x128xf32> -> vector<1x256xf32>
    %c1_i32 = arith.constant 1 : i32
    %41 = arith.truncf %38 : vector<1x256xf32> to vector<1x256xbf16>
    %cst_16 = arith.constant dense<0.000000e+00> : vector<1x1024xf32>
    %42 = tpu.matmul %41, %8, %cst_16 {dimension_numbers = #tpu.dot_dimension_numbers<[1], [0], [0], [1], [0, 0, 1, 1], [], []>} : vector<1x256xbf16>, vector<256x1024xbf16>, vector<1x1024xf32> -> vector<1x1024xf32>
    %43 = arith.index_cast %c1_i32 : i32 to index
    %c0_17 = arith.constant 0 : index
    %44 = vector.load %arg7[%43, %c0_17] : memref<4x1024xf32, #tpu.memory_space<vmem>>, vector<1x1024xf32>
    %45 = arith.addf %42, %44 : vector<1x1024xf32>
    %46 = vector.extract_strided_slice %45 {offsets = [0, 0], sizes = [1, 256], strides = [1, 1]} : vector<1x1024xf32> to vector<1x256xf32>
    %47 = arith.negf %46 : vector<1x256xf32>
    %48 = math.exp %47 : vector<1x256xf32>
    %cst_18 = arith.constant 1.000000e+00 : f32
    %49 = vector.broadcast %cst_18 : f32 to vector<1x256xf32>
    %50 = arith.addf %49, %48 : vector<1x256xf32>
    %51 = arith.divf %49, %50 : vector<1x256xf32>
    %52 = vector.extract_strided_slice %45 {offsets = [0, 256], sizes = [1, 256], strides = [1, 1]} : vector<1x1024xf32> to vector<1x256xf32>
    %53 = arith.negf %52 : vector<1x256xf32>
    %54 = math.exp %53 : vector<1x256xf32>
    %cst_19 = arith.constant 1.000000e+00 : f32
    %55 = vector.broadcast %cst_19 : f32 to vector<1x256xf32>
    %56 = arith.addf %55, %54 : vector<1x256xf32>
    %57 = arith.divf %55, %56 : vector<1x256xf32>
    %58 = vector.extract_strided_slice %45 {offsets = [0, 512], sizes = [1, 256], strides = [1, 1]} : vector<1x1024xf32> to vector<1x256xf32>
    %59 = math.tanh %58 : vector<1x256xf32>
    %60 = vector.extract_strided_slice %45 {offsets = [0, 768], sizes = [1, 256], strides = [1, 1]} : vector<1x1024xf32> to vector<1x256xf32>
    %61 = arith.negf %60 : vector<1x256xf32>
    %62 = math.exp %61 : vector<1x256xf32>
    %cst_20 = arith.constant 1.000000e+00 : f32
    %63 = vector.broadcast %cst_20 : f32 to vector<1x256xf32>
    %64 = arith.addf %63, %62 : vector<1x256xf32>
    %65 = arith.divf %63, %64 : vector<1x256xf32>
    %66 = arith.mulf %57, %40 : vector<1x256xf32>
    %67 = arith.mulf %51, %59 : vector<1x256xf32>
    %68 = arith.addf %66, %67 : vector<1x256xf32>
    %69 = math.tanh %68 : vector<1x256xf32>
    %70 = arith.mulf %65, %69 : vector<1x256xf32>
    %71 = vector.extract_strided_slice %70 {offsets = [0, 128], sizes = [1, 128], strides = [1, 1]} : vector<1x256xf32> to vector<1x128xf32>
    %72 = arith.truncf %71 : vector<1x128xf32> to vector<1x128xbf16>
    %c1_i32_21 = arith.constant 1 : i32
    %73 = arith.subi %c1_i32, %c1_i32_21 : i32
    %74 = arith.index_cast %73 : i32 to index
    %c0_22 = arith.constant 0 : index
    %75 = vector.load %arg8[%74, %c0_22] : memref<4x128xbf16, #tpu.memory_space<vmem>>, vector<1x128xbf16>
    tpu.vector_store %arg8[%74, %c0_22], %72 {strides = array<i32>} : memref<4x128xbf16, #tpu.memory_space<vmem>>, vector<1x128xbf16>,
    %c2_i32 = arith.constant 2 : i32
    %76 = arith.truncf %70 : vector<1x256xf32> to vector<1x256xbf16>
    %cst_23 = arith.constant dense<0.000000e+00> : vector<1x1024xf32>
    %77 = tpu.matmul %76, %8, %cst_23 {dimension_numbers = #tpu.dot_dimension_numbers<[1], [0], [0], [1], [0, 0, 1, 1], [], []>} : vector<1x256xbf16>, vector<256x1024xbf16>, vector<1x1024xf32> -> vector<1x1024xf32>
    %78 = arith.index_cast %c2_i32 : i32 to index
    %c0_24 = arith.constant 0 : index
    %79 = vector.load %arg7[%78, %c0_24] : memref<4x1024xf32, #tpu.memory_space<vmem>>, vector<1x1024xf32>
    %80 = arith.addf %77, %79 : vector<1x1024xf32>
    %81 = vector.extract_strided_slice %80 {offsets = [0, 0], sizes = [1, 256], strides = [1, 1]} : vector<1x1024xf32> to vector<1x256xf32>
    %82 = arith.negf %81 : vector<1x256xf32>
    %83 = math.exp %82 : vector<1x256xf32>
    %cst_25 = arith.constant 1.000000e+00 : f32
    %84 = vector.broadcast %cst_25 : f32 to vector<1x256xf32>
    %85 = arith.addf %84, %83 : vector<1x256xf32>
    %86 = arith.divf %84, %85 : vector<1x256xf32>
    %87 = vector.extract_strided_slice %80 {offsets = [0, 256], sizes = [1, 256], strides = [1, 1]} : vector<1x1024xf32> to vector<1x256xf32>
    %88 = arith.negf %87 : vector<1x256xf32>
    %89 = math.exp %88 : vector<1x256xf32>
    %cst_26 = arith.constant 1.000000e+00 : f32
    %90 = vector.broadcast %cst_26 : f32 to vector<1x256xf32>
    %91 = arith.addf %90, %89 : vector<1x256xf32>
    %92 = arith.divf %90, %91 : vector<1x256xf32>
    %93 = vector.extract_strided_slice %80 {offsets = [0, 512], sizes = [1, 256], strides = [1, 1]} : vector<1x1024xf32> to vector<1x256xf32>
    %94 = math.tanh %93 : vector<1x256xf32>
    %95 = vector.extract_strided_slice %80 {offsets = [0, 768], sizes = [1, 256], strides = [1, 1]} : vector<1x1024xf32> to vector<1x256xf32>
    %96 = arith.negf %95 : vector<1x256xf32>
    %97 = math.exp %96 : vector<1x256xf32>
    %cst_27 = arith.constant 1.000000e+00 : f32
    %98 = vector.broadcast %cst_27 : f32 to vector<1x256xf32>
    %99 = arith.addf %98, %97 : vector<1x256xf32>
    %100 = arith.divf %98, %99 : vector<1x256xf32>
    %101 = arith.mulf %92, %68 : vector<1x256xf32>
    %102 = arith.mulf %86, %94 : vector<1x256xf32>
    %103 = arith.addf %101, %102 : vector<1x256xf32>
    %104 = math.tanh %103 : vector<1x256xf32>
    %105 = arith.mulf %100, %104 : vector<1x256xf32>
    %106 = vector.extract_strided_slice %105 {offsets = [0, 128], sizes = [1, 128], strides = [1, 1]} : vector<1x256xf32> to vector<1x128xf32>
    %107 = arith.truncf %106 : vector<1x128xf32> to vector<1x128xbf16>
    %c1_i32_28 = arith.constant 1 : i32
    %108 = arith.subi %c2_i32, %c1_i32_28 : i32
    %109 = arith.index_cast %108 : i32 to index
    %c0_29 = arith.constant 0 : index
    %110 = vector.load %arg8[%109, %c0_29] : memref<4x128xbf16, #tpu.memory_space<vmem>>, vector<1x128xbf16>
    tpu.vector_store %arg8[%109, %c0_29], %107 {strides = array<i32>} : memref<4x128xbf16, #tpu.memory_space<vmem>>, vector<1x128xbf16>,
    %c3_i32 = arith.constant 3 : i32
    %111 = arith.truncf %105 : vector<1x256xf32> to vector<1x256xbf16>
    %cst_30 = arith.constant dense<0.000000e+00> : vector<1x1024xf32>
    %112 = tpu.matmul %111, %8, %cst_30 {dimension_numbers = #tpu.dot_dimension_numbers<[1], [0], [0], [1], [0, 0, 1, 1], [], []>} : vector<1x256xbf16>, vector<256x1024xbf16>, vector<1x1024xf32> -> vector<1x1024xf32>
    %113 = arith.index_cast %c3_i32 : i32 to index
    %c0_31 = arith.constant 0 : index
    %114 = vector.load %arg7[%113, %c0_31] : memref<4x1024xf32, #tpu.memory_space<vmem>>, vector<1x1024xf32>
    %115 = arith.addf %112, %114 : vector<1x1024xf32>
    %116 = vector.extract_strided_slice %115 {offsets = [0, 0], sizes = [1, 256], strides = [1, 1]} : vector<1x1024xf32> to vector<1x256xf32>
    %117 = arith.negf %116 : vector<1x256xf32>
    %118 = math.exp %117 : vector<1x256xf32>
    %cst_32 = arith.constant 1.000000e+00 : f32
    %119 = vector.broadcast %cst_32 : f32 to vector<1x256xf32>
    %120 = arith.addf %119, %118 : vector<1x256xf32>
    %121 = arith.divf %119, %120 : vector<1x256xf32>
    %122 = vector.extract_strided_slice %115 {offsets = [0, 256], sizes = [1, 256], strides = [1, 1]} : vector<1x1024xf32> to vector<1x256xf32>
    %123 = arith.negf %122 : vector<1x256xf32>
    %124 = math.exp %123 : vector<1x256xf32>
    %cst_33 = arith.constant 1.000000e+00 : f32
    %125 = vector.broadcast %cst_33 : f32 to vector<1x256xf32>
    %126 = arith.addf %125, %124 : vector<1x256xf32>
    %127 = arith.divf %125, %126 : vector<1x256xf32>
    %128 = vector.extract_strided_slice %115 {offsets = [0, 512], sizes = [1, 256], strides = [1, 1]} : vector<1x1024xf32> to vector<1x256xf32>
    %129 = math.tanh %128 : vector<1x256xf32>
    %130 = vector.extract_strided_slice %115 {offsets = [0, 768], sizes = [1, 256], strides = [1, 1]} : vector<1x1024xf32> to vector<1x256xf32>
    %131 = arith.negf %130 : vector<1x256xf32>
    %132 = math.exp %131 : vector<1x256xf32>
    %cst_34 = arith.constant 1.000000e+00 : f32
    %133 = vector.broadcast %cst_34 : f32 to vector<1x256xf32>
    %134 = arith.addf %133, %132 : vector<1x256xf32>
    %135 = arith.divf %133, %134 : vector<1x256xf32>
    %136 = arith.mulf %127, %103 : vector<1x256xf32>
    %137 = arith.mulf %121, %129 : vector<1x256xf32>
    %138 = arith.addf %136, %137 : vector<1x256xf32>
    %139 = math.tanh %138 : vector<1x256xf32>
    %140 = arith.mulf %135, %139 : vector<1x256xf32>
    %141 = vector.extract_strided_slice %140 {offsets = [0, 128], sizes = [1, 128], strides = [1, 1]} : vector<1x256xf32> to vector<1x128xf32>
    %142 = arith.truncf %141 : vector<1x128xf32> to vector<1x128xbf16>
    %c1_i32_35 = arith.constant 1 : i32
    %143 = arith.subi %c3_i32, %c1_i32_35 : i32
    %144 = arith.index_cast %143 : i32 to index
    %c0_36 = arith.constant 0 : index
    %145 = vector.load %arg8[%144, %c0_36] : memref<4x128xbf16, #tpu.memory_space<vmem>>, vector<1x128xbf16>
    tpu.vector_store %arg8[%144, %c0_36], %142 {strides = array<i32>} : memref<4x128xbf16, #tpu.memory_space<vmem>>, vector<1x128xbf16>,
    %c3_i32_37 = arith.constant 3 : i32
    %146 = arith.truncf %140 : vector<1x256xf32> to vector<1x256xbf16>
    %cst_38 = arith.constant dense<0.000000e+00> : vector<1x1024xf32>
    %147 = tpu.matmul %146, %8, %cst_38 {dimension_numbers = #tpu.dot_dimension_numbers<[1], [0], [0], [1], [0, 0, 1, 1], [], []>} : vector<1x256xbf16>, vector<256x1024xbf16>, vector<1x1024xf32> -> vector<1x1024xf32>
    %c3 = arith.constant 3 : index
    %c0_39 = arith.constant 0 : index
    %148 = vector.load %arg7[%c3, %c0_39] : memref<4x1024xf32, #tpu.memory_space<vmem>>, vector<1x1024xf32>
    %149 = arith.addf %147, %148 : vector<1x1024xf32>
    %150 = vector.extract_strided_slice %149 {offsets = [0, 0], sizes = [1, 256], strides = [1, 1]} : vector<1x1024xf32> to vector<1x256xf32>
    %151 = arith.negf %150 : vector<1x256xf32>
    %152 = math.exp %151 : vector<1x256xf32>
    %cst_40 = arith.constant 1.000000e+00 : f32
    %153 = vector.broadcast %cst_40 : f32 to vector<1x256xf32>
    %154 = arith.addf %153, %152 : vector<1x256xf32>
    %155 = arith.divf %153, %154 : vector<1x256xf32>
    %156 = vector.extract_strided_slice %149 {offsets = [0, 256], sizes = [1, 256], strides = [1, 1]} : vector<1x1024xf32> to vector<1x256xf32>
    %157 = arith.negf %156 : vector<1x256xf32>
    %158 = math.exp %157 : vector<1x256xf32>
    %cst_41 = arith.constant 1.000000e+00 : f32
    %159 = vector.broadcast %cst_41 : f32 to vector<1x256xf32>
    %160 = arith.addf %159, %158 : vector<1x256xf32>
    %161 = arith.divf %159, %160 : vector<1x256xf32>
    %162 = vector.extract_strided_slice %149 {offsets = [0, 512], sizes = [1, 256], strides = [1, 1]} : vector<1x1024xf32> to vector<1x256xf32>
    %163 = math.tanh %162 : vector<1x256xf32>
    %164 = vector.extract_strided_slice %149 {offsets = [0, 768], sizes = [1, 256], strides = [1, 1]} : vector<1x1024xf32> to vector<1x256xf32>
    %165 = arith.negf %164 : vector<1x256xf32>
    %166 = math.exp %165 : vector<1x256xf32>
    %cst_42 = arith.constant 1.000000e+00 : f32
    %167 = vector.broadcast %cst_42 : f32 to vector<1x256xf32>
    %168 = arith.addf %167, %166 : vector<1x256xf32>
    %169 = arith.divf %167, %168 : vector<1x256xf32>
    %170 = arith.mulf %161, %138 : vector<1x256xf32>
    %171 = arith.mulf %155, %163 : vector<1x256xf32>
    %172 = arith.addf %170, %171 : vector<1x256xf32>
    %173 = math.tanh %172 : vector<1x256xf32>
    %174 = arith.mulf %169, %173 : vector<1x256xf32>
    %175 = vector.extract_strided_slice %174 {offsets = [0, 128], sizes = [1, 128], strides = [1, 1]} : vector<1x256xf32> to vector<1x128xf32>
    %176 = arith.truncf %175 : vector<1x128xf32> to vector<1x128xbf16>
    %c3_43 = arith.constant 3 : index
    %c0_44 = arith.constant 0 : index
    %177 = vector.load %arg8[%c3_43, %c0_44] : memref<4x128xbf16, #tpu.memory_space<vmem>>, vector<1x128xbf16>
    tpu.vector_store %arg8[%c3_43, %c0_44], %176 {strides = array<i32>} : memref<4x128xbf16, #tpu.memory_space<vmem>>, vector<1x128xbf16>,
    tpu.wait_dma2 semaphore(%arg10 : memref<!tpu.dma_semaphore, #tpu.memory_space<semaphore_mem>>) src(%arg4 : memref<128x128xbf16, #tpu.memory_space<any>>) dst(%arg9 : memref<128x128xbf16, #tpu.memory_space<vmem>>)
    %c0_45 = arith.constant 0 : index
    %c0_46 = arith.constant 0 : index
    %178 = vector.load %arg8[%c0_45, %c0_46] : memref<4x128xbf16, #tpu.memory_space<vmem>>, vector<4x128xbf16>
    %c0_47 = arith.constant 0 : index
    %c0_48 = arith.constant 0 : index
    %179 = vector.load %arg9[%c0_47, %c0_48] : memref<128x128xbf16, #tpu.memory_space<vmem>>, vector<128x128xbf16>
    %cst_49 = arith.constant dense<0.000000e+00> : vector<4x128xf32>
    %180 = tpu.matmul %178, %179, %cst_49 {dimension_numbers = #tpu.dot_dimension_numbers<[1], [0], [0], [1], [0, 0, 1, 1], [], []>} : vector<4x128xbf16>, vector<128x128xbf16>, vector<4x128xf32> -> vector<4x128xf32>
    %c0_50 = arith.constant 0 : index
    %c0_51 = arith.constant 0 : index
    %181 = vector.load %arg5[%c0_50, %c0_51] : memref<1x128xf32, #tpu.memory_space<vmem>>, vector<1x128xf32>
    %182 = vector.broadcast %181 : vector<1x128xf32> to vector<4x128xf32>
    %183 = arith.addf %180, %182 : vector<4x128xf32>
    %c0_52 = arith.constant 0 : index
    %c0_53 = arith.constant 0 : index
    %184 = vector.load %arg6[%c0_52, %c0_53] : memref<4x128xf32, #tpu.memory_space<vmem>>, vector<4x128xf32>
    tpu.vector_store %arg6[%c0_52, %c0_53], %183 {strides = array<i32>} : memref<4x128xf32, #tpu.memory_space<vmem>>, vector<4x128xf32>,
    return
  }
}

</mosaic_0001>

<llo_original>
// kernel: tpu_custom_call.1
$region0: #{tpu_custom_call.1}
  #allocation0 [shape = 'u32[]', space=smem, size = 0x4, offset = 0x4, fixed_abs, tag = 'smem constant byte address 0x4 - core index']
  #allocation1 [shape = 'u32[144,128]{1,0:T(1,128)}', space=vmem, size = 0x12000, scoped, tag = 'internal scratch']
  #allocation2 [shape = 'f32[4,1024]{1,0:T(4,128)}', space=vmem, size = 0x4000, scoped, tag = 'scratch operand']
  #allocation3 [shape = 'bf16[4,128]{1,0:T(4,128)(2,1)}', space=vmem, size = 0x400, scoped, tag = 'scratch operand']
  #allocation4 [shape = 'bf16[128,128]{1,0:T(16,128)(2,1)}', space=vmem, size = 0x8000, scoped, tag = 'scratch operand']
  #allocation5 [shape = 's32[1]{0}', space=sflag, size = 0x4, scoped, tag = 'scratch operand']
  #allocation15 [shape = 's32[]', space=sflag, size = 0x4, offset = 0, fixed_abs, tag = 'sflag constant byte address 0x0 - dummy sync flag']
  #allocation16 [shape = 's32[]', space=sflag, size = 0x4, offset = 0, fixed_abs, tag = 'sflag constant byte address 0x0 - dummy sync flag']
  #allocation17 [shape = 'u32[]', space=smem, size = 0x4, offset = 0x44, fixed_abs, tag = 'smem constant byte address 0x44 - assertion arg 0']
  #allocation18 [shape = 'u32[]', space=smem, size = 0x4, offset = 0x48, fixed_abs, tag = 'smem constant byte address 0x48 - assertion arg 1']
  %s0 = inlined_call_operand.hbm [shape: f32[4,128], index: 0, kind: input, shape index: {}]
  %s1 = inlined_call_operand.hbm [shape: bf16[128,1024], index: 1, kind: input, shape index: {}]
  %s2 = inlined_call_operand.hbm [shape: f32[1,1024], index: 2, kind: input, shape index: {}]
  %s3 = inlined_call_operand.hbm [shape: bf16[256,1024], index: 3, kind: input, shape index: {}]
  %s4 = inlined_call_operand.hbm [shape: bf16[128,128], index: 4, kind: input, shape index: {}]
  %s5 = inlined_call_operand.vmem [shape: f32[1,128], index: 5, kind: input, shape index: {}]
  %s6 = inlined_call_operand.hbm [shape: f32[4,128], index: 6, kind: output, shape index: {}]
  %s7 = sld [smem:[#allocation0]]
  $region50: #{tpu_custom_call.1} parent=0
    _
  %s9 = ssub.s32 1, %s7
  %s10 = scalar_select 0, %s9, %s7
  $region1: #{tpu_custom_call.1} parent=0
    #allocation6 [shape = 'u8[2048]{0}', space=vmem, size = 0x800, scoped, tag = 'input window, operand 0, single buffered']
    #allocation7 [shape = 's32[1]{0}', space=sflag, size = 0x4, scoped, tag = 'scoped memory for tpu_custom_call.1']
    #allocation8 [shape = 's32[1]{0}', space=sflag, size = 0x4, scoped, tag = 'scoped memory for tpu_custom_call.1']
    #allocation9 [shape = 'u8[262144]{0}', space=vmem, size = 0x40000, scoped, tag = 'input window, operand 1, single buffered']
    #allocation10 [shape = 's32[1]{0}', space=sflag, size = 0x4, scoped, tag = 'scoped memory for tpu_custom_call.1']
    #allocation11 [shape = 'u8[4096]{0}', space=vmem, size = 0x1000, scoped, tag = 'input window, operand 2, single buffered']
    #allocation12 [shape = 'u8[524288]{0}', space=vmem, size = 0x80000, scoped, tag = 'input window, operand 3, single buffered']
    #allocation13 [shape = 's32[1]{0}', space=sflag, size = 0x4, scoped, tag = 'scoped memory for tpu_custom_call.1']
    #allocation14 [shape = 'u8[2048]{0}', space=vmem, size = 0x800, scoped, tag = 'output window, operand 0, single buffered']
    %11 = vsyncpa [#allocation7], 0
    %12 = vsyncpa [#allocation10], 0
    %13 = vsyncpa [#allocation13], 0
    %14 = vsyncpa [#allocation8], 0
    // Predicated region
    $region2: #{tpu_custom_call.1} parent=1 // pred_check
      _
    $region3: #{tpu_custom_call.1} parent=1 // pred_check_branch
      %16 = sbr.rel (0) target = $region5
    $region4: #{tpu_custom_call.1} parent=1 // pred_region
      %s18 = ssub.s32 64, 64
      %19 = vsyncadd [#allocation7], %s18
      %s21 = sshll.u32 [#allocation6], 4
      %s22 = int_to_ptr.vmem [resolvable:$true] %s21
      %24 = dma.hbm_to_vmem [thread:$0]  %s0, 64, %s22, [#allocation7]
    $region5: #{tpu_custom_call.1} parent=1 // pred_fallthru
      _
    // Predicated region
    $region6: #{tpu_custom_call.1} parent=1 // pred_check
      _
    $region7: #{tpu_custom_call.1} parent=1 // pred_check_branch
      %26 = sbr.rel (0) target = $region9
    $region8: #{tpu_custom_call.1} parent=1 // pred_region
      %s28 = ssub.s32 8192, 8192
      %29 = vsyncadd [#allocation10], %s28
      %s30 = sshll.u32 [#allocation9], 4
      %s31 = int_to_ptr.vmem [resolvable:$true] %s30
      %36 = dma.hbm_to_vmem [thread:$0]  %s1, 8192, %s31, [#allocation10], 512, 512, 32
    $region9: #{tpu_custom_call.1} parent=1 // pred_fallthru
      _
    // Predicated region
    $region10: #{tpu_custom_call.1} parent=1 // pred_check
      _
    $region11: #{tpu_custom_call.1} parent=1 // pred_check_branch
      %38 = sbr.rel (0) target = $region13
    $region12: #{tpu_custom_call.1} parent=1 // pred_region
      %s40 = ssub.s32 128, 128
      %41 = vsyncadd [#allocation10], %s40
      %s43 = sshll.u32 [#allocation11], 4
      %s44 = int_to_ptr.vmem [resolvable:$true] %s43
      %46 = dma.hbm_to_vmem [thread:$0]  %s2, 128, %s44, [#allocation10]
    $region13: #{tpu_custom_call.1} parent=1 // pred_fallthru
      _
    // Predicated region
    $region14: #{tpu_custom_call.1} parent=1 // pred_check
      _
    $region15: #{tpu_custom_call.1} parent=1 // pred_check_branch
      %48 = sbr.rel (0) target = $region17
    $region16: #{tpu_custom_call.1} parent=1 // pred_region
      %s50 = ssub.s32 16384, 16384
      %51 = vsyncadd [#allocation13], %s50
      %s52 = sshll.u32 [#allocation12], 4
      %s53 = int_to_ptr.vmem [resolvable:$true] %s52
      %58 = dma.hbm_to_vmem [thread:$0]  %s3, 16384, %s53, [#allocation13], 512, 512, 32
    $region17: #{tpu_custom_call.1} parent=1 // pred_fallthru
      _
    // Predicated region
    $region18: #{tpu_custom_call.1} parent=1 // pred_check
      _
    $region19: #{tpu_custom_call.1} parent=1 // pred_check_branch
      %60 = sbr.rel (0) target = $region21
    $region20: #{tpu_custom_call.1} parent=1 // pred_region
      _
    $region21: #{tpu_custom_call.1} parent=1 // pred_fallthru
      _
    // Predicated region
    $region22: #{tpu_custom_call.1} parent=1 // pred_check
      _
    $region23: #{tpu_custom_call.1} parent=1 // pred_check_branch
      %62 = sbr.rel (0) target = $region25
    $region24: #{tpu_custom_call.1} parent=1 // pred_region
      %63 = dma.done [#allocation7], 64
    $region25: #{tpu_custom_call.1} parent=1 // pred_fallthru
      _
    // Predicated region
    $region26: #{tpu_custom_call.1} parent=1 // pred_check
      _
    $region27: #{tpu_custom_call.1} parent=1 // pred_check_branch
      %65 = sbr.rel (0) target = $region29
    $region28: #{tpu_custom_call.1} parent=1 // pred_region
      %66 = dma.done [#allocation10], 8192
    $region29: #{tpu_custom_call.1} parent=1 // pred_fallthru
      _
    // Predicated region
    $region30: #{tpu_custom_call.1} parent=1 // pred_check
      _
    $region31: #{tpu_custom_call.1} parent=1 // pred_check_branch
      %68 = sbr.rel (0) target = $region33
    $region32: #{tpu_custom_call.1} parent=1 // pred_region
      %69 = dma.done [#allocation10], 128
    $region33: #{tpu_custom_call.1} parent=1 // pred_fallthru
      _
    // Predicated region
    $region34: #{tpu_custom_call.1} parent=1 // pred_check
      _
    $region35: #{tpu_custom_call.1} parent=1 // pred_check_branch
      %71 = sbr.rel (0) target = $region37
    $region36: #{tpu_custom_call.1} parent=1 // pred_region
      %72 = dma.done [#allocation13], 16384
    $region37: #{tpu_custom_call.1} parent=1 // pred_fallthru
      _
    // Predicated region
    $region38: #{tpu_custom_call.1} parent=1 // pred_check
      _
    $region39: #{tpu_custom_call.1} parent=1 // pred_check_branch
      %75 = sbr.rel target = $region41
    $region40: #{tpu_custom_call.1} parent=1 // pred_region
      %76 = sst [smem:[#allocation17]] [#allocation16]
      %77 = sst [smem:[#allocation18]] [#allocation15]
    $region41: #{tpu_custom_call.1} parent=1 // pred_fallthru
      _
    %79 = shalt.err (0)
    %s81 = sshll.u32 [#allocation4], 4
    %s82 = int_to_ptr.vmem [resolvable:$true] %s81
    %84 = dma.hbm_to_vmem [thread:$0]  %s4, 1024, %s82, [#allocation5]
    %v85 = vld [vmem:[#allocation6] sm:$0xf]
    %v86 = vpack.c.bf16 %v85, %v85
    %v87 = vld [vmem:[#allocation9] sm:$0xff]
    %v88 = vld [vmem:[#allocation9 + $0x8] sm:$0xff]
    %v89 = vld [vmem:[#allocation9 + $0x10] sm:$0xff]
    %v90 = vld [vmem:[#allocation9 + $0x18] sm:$0xff]
    %v91 = vld [vmem:[#allocation9 + $0x20] sm:$0xff]
    %v92 = vld [vmem:[#allocation9 + $0x28] sm:$0xff]
    %v93 = vld [vmem:[#allocation9 + $0x30] sm:$0xff]
    %v94 = vld [vmem:[#allocation9 + $0x38] sm:$0xff]
    %v95 = vld [vmem:[#allocation9 + $0x40] sm:$0xff]
    %v96 = vld [vmem:[#allocation9 + $0x48] sm:$0xff]
    %v97 = vld [vmem:[#allocation9 + $0x50] sm:$0xff]
    %v98 = vld [vmem:[#allocation9 + $0x58] sm:$0xff]
    %v99 = vld [vmem:[#allocation9 + $0x60] sm:$0xff]
    %v100 = vld [vmem:[#allocation9 + $0x68] sm:$0xff]
    %v101 = vld [vmem:[#allocation9 + $0x70] sm:$0xff]
    %v102 = vld [vmem:[#allocation9 + $0x78] sm:$0xff]
    %v103 = vld [vmem:[#allocation9 + $0x80] sm:$0xff]
    %v104 = vld [vmem:[#allocation9 + $0x88] sm:$0xff]
    %v105 = vld [vmem:[#allocation9 + $0x90] sm:$0xff]
    %v106 = vld [vmem:[#allocation9 + $0x98] sm:$0xff]
    %v107 = vld [vmem:[#allocation9 + $0xa0] sm:$0xff]
    %v108 = vld [vmem:[#allocation9 + $0xa8] sm:$0xff]
    %v109 = vld [vmem:[#allocation9 + $0xb0] sm:$0xff]
    %v110 = vld [vmem:[#allocation9 + $0xb8] sm:$0xff]
    %v111 = vld [vmem:[#allocation9 + $0xc0] sm:$0xff]
    %v112 = vld [vmem:[#allocation9 + $0xc8] sm:$0xff]
    %v113 = vld [vmem:[#allocation9 + $0xd0] sm:$0xff]
    %v114 = vld [vmem:[#allocation9 + $0xd8] sm:$0xff]
    %v115 = vld [vmem:[#allocation9 + $0xe0] sm:$0xff]
    %v116 = vld [vmem:[#allocation9 + $0xe8] sm:$0xff]
    %v117 = vld [vmem:[#allocation9 + $0xf0] sm:$0xff]
    %v118 = vld [vmem:[#allocation9 + $0xf8] sm:$0xff]
    %v119 = vld [vmem:[#allocation9 + $0x100] sm:$0xff]
    %v120 = vld [vmem:[#allocation9 + $0x108] sm:$0xff]
    %v121 = vld [vmem:[#allocation9 + $0x110] sm:$0xff]
    %v122 = vld [vmem:[#allocation9 + $0x118] sm:$0xff]
    %v123 = vld [vmem:[#allocation9 + $0x120] sm:$0xff]
    %v124 = vld [vmem:[#allocation9 + $0x128] sm:$0xff]
    %v125 = vld [vmem:[#allocation9 + $0x130] sm:$0xff]
    %v126 = vld [vmem:[#allocation9 + $0x138] sm:$0xff]
    %v127 = vld [vmem:[#allocation9 + $0x140] sm:$0xff]
    %v128 = vld [vmem:[#allocation9 + $0x148] sm:$0xff]
    %v129 = vld [vmem:[#allocation9 + $0x150] sm:$0xff]
    %v130 = vld [vmem:[#allocation9 + $0x158] sm:$0xff]
    %v131 = vld [vmem:[#allocation9 + $0x160] sm:$0xff]
    %v132 = vld [vmem:[#allocation9 + $0x168] sm:$0xff]
    %v133 = vld [vmem:[#allocation9 + $0x170] sm:$0xff]
    %v134 = vld [vmem:[#allocation9 + $0x178] sm:$0xff]
    %v135 = vld [vmem:[#allocation9 + $0x180] sm:$0xff]
    %v136 = vld [vmem:[#allocation9 + $0x188] sm:$0xff]
    %v137 = vld [vmem:[#allocation9 + $0x190] sm:$0xff]
    %v138 = vld [vmem:[#allocation9 + $0x198] sm:$0xff]
    %v139 = vld [vmem:[#allocation9 + $0x1a0] sm:$0xff]
    %v140 = vld [vmem:[#allocation9 + $0x1a8] sm:$0xff]
    %v141 = vld [vmem:[#allocation9 + $0x1b0] sm:$0xff]
    %v142 = vld [vmem:[#allocation9 + $0x1b8] sm:$0xff]
    %v143 = vld [vmem:[#allocation9 + $0x1c0] sm:$0xff]
    %v144 = vld [vmem:[#allocation9 + $0x1c8] sm:$0xff]
    %v145 = vld [vmem:[#allocation9 + $0x1d0] sm:$0xff]
    %v146 = vld [vmem:[#allocation9 + $0x1d8] sm:$0xff]
    %v147 = vld [vmem:[#allocation9 + $0x1e0] sm:$0xff]
    %v148 = vld [vmem:[#allocation9 + $0x1e8] sm:$0xff]
    %v149 = vld [vmem:[#allocation9 + $0x1f0] sm:$0xff]
    %v150 = vld [vmem:[#allocation9 + $0x1f8] sm:$0xff]
    %v151 = vld [vmem:[#allocation11] sm:$0xff]
    %v153 = vlaneseq
    %v154 = vshrl.u32 %v153, 7
    %v155 = vsub.s32 0, %v154
    %v156 = vrot.slane %v151, %v155
    %v157 = vlaneseq
    %v158 = vshrl.u32 %v157, 7
    %v159 = vsub.s32 1, %v158
    %v160 = vrot.slane %v151, %v159
    %v161 = vlaneseq
    %v162 = vshrl.u32 %v161, 7
    %v163 = vsub.s32 2, %v162
    %v164 = vrot.slane %v151, %v163
    %v165 = vlaneseq
    %v166 = vshrl.u32 %v165, 7
    %v167 = vsub.s32 3, %v166
    %v168 = vrot.slane %v151, %v167
    %v169 = vlaneseq
    %v170 = vshrl.u32 %v169, 7
    %v171 = vsub.s32 4, %v170
    %v172 = vrot.slane %v151, %v171
    %v173 = vlaneseq
    %v174 = vshrl.u32 %v173, 7
    %v175 = vsub.s32 5, %v174
    %v176 = vrot.slane %v151, %v175
    %v177 = vlaneseq
    %v178 = vshrl.u32 %v177, 7
    %v179 = vsub.s32 6, %v178
    %v180 = vrot.slane %v151, %v179
    %v181 = vlaneseq
    %v182 = vshrl.u32 %v181, 7
    %v183 = vsub.s32 7, %v182
    %v184 = vrot.slane %v151, %v183
    %v257 = vunpack.c.l.b16 %v87
    %v258 = vunpack.c.h.b16 %v87
    %v259 = vunpack.c.l.b16 %v88
    %v260 = vunpack.c.h.b16 %v88
    %v261 = vunpack.c.l.b16 %v89
    %v262 = vunpack.c.h.b16 %v89
    %v263 = vunpack.c.l.b16 %v90
    %v264 = vunpack.c.h.b16 %v90
    %v265 = vunpack.c.l.b16 %v91
    %v266 = vunpack.c.h.b16 %v91
    %v267 = vunpack.c.l.b16 %v92
    %v268 = vunpack.c.h.b16 %v92
    %v269 = vunpack.c.l.b16 %v93
    %v270 = vunpack.c.h.b16 %v93
    %v271 = vunpack.c.l.b16 %v94
    %v272 = vunpack.c.h.b16 %v94
    %v273 = vunpack.c.l.b16 %v95
    %v274 = vunpack.c.h.b16 %v95
    %v275 = vunpack.c.l.b16 %v96
    %v276 = vunpack.c.h.b16 %v96
    %v277 = vunpack.c.l.b16 %v97
    %v278 = vunpack.c.h.b16 %v97
    %v279 = vunpack.c.l.b16 %v98
    %v280 = vunpack.c.h.b16 %v98
    %v281 = vunpack.c.l.b16 %v99
    %v282 = vunpack.c.h.b16 %v99
    %v283 = vunpack.c.l.b16 %v100
    %v284 = vunpack.c.h.b16 %v100
    %v285 = vunpack.c.l.b16 %v101
    %v286 = vunpack.c.h.b16 %v101
    %v287 = vunpack.c.l.b16 %v102
    %v288 = vunpack.c.h.b16 %v102
    %v289 = vunpack.c.l.b16 %v103
    %v290 = vunpack.c.h.b16 %v103
    %v291 = vunpack.c.l.b16 %v104
    %v292 = vunpack.c.h.b16 %v104
    %v293 = vunpack.c.l.b16 %v105
    %v294 = vunpack.c.h.b16 %v105
    %v295 = vunpack.c.l.b16 %v106
    %v296 = vunpack.c.h.b16 %v106
    %v297 = vunpack.c.l.b16 %v107
    %v298 = vunpack.c.h.b16 %v107
    %v299 = vunpack.c.l.b16 %v108
    %v300 = vunpack.c.h.b16 %v108
    %v301 = vunpack.c.l.b16 %v109
    %v302 = vunpack.c.h.b16 %v109
    %v303 = vunpack.c.l.b16 %v110
    %v304 = vunpack.c.h.b16 %v110
    %v305 = vunpack.c.l.b16 %v111
    %v306 = vunpack.c.h.b16 %v111
    %v307 = vunpack.c.l.b16 %v112
    %v308 = vunpack.c.h.b16 %v112
    %v309 = vunpack.c.l.b16 %v113
    %v310 = vunpack.c.h.b16 %v113
    %v311 = vunpack.c.l.b16 %v114
    %v312 = vunpack.c.h.b16 %v114
    %v313 = vunpack.c.l.b16 %v115
    %v314 = vunpack.c.h.b16 %v115
    %v315 = vunpack.c.l.b16 %v116
    %v316 = vunpack.c.h.b16 %v116
    %v317 = vunpack.c.l.b16 %v117
    %v318 = vunpack.c.h.b16 %v117
    %v319 = vunpack.c.l.b16 %v118
    %v320 = vunpack.c.h.b16 %v118
    %v321 = vunpack.c.l.b16 %v119
    %v322 = vunpack.c.h.b16 %v119
    %v323 = vunpack.c.l.b16 %v120
    %v324 = vunpack.c.h.b16 %v120
    %v325 = vunpack.c.l.b16 %v121
    %v326 = vunpack.c.h.b16 %v121
    %v327 = vunpack.c.l.b16 %v122
    %v328 = vunpack.c.h.b16 %v122
    %v329 = vunpack.c.l.b16 %v123
    %v330 = vunpack.c.h.b16 %v123
    %v331 = vunpack.c.l.b16 %v124
    %v332 = vunpack.c.h.b16 %v124
    %v333 = vunpack.c.l.b16 %v125
    %v334 = vunpack.c.h.b16 %v125
    %v335 = vunpack.c.l.b16 %v126
    %v336 = vunpack.c.h.b16 %v126
    %v337 = vunpack.c.l.b16 %v127
    %v338 = vunpack.c.h.b16 %v127
    %v339 = vunpack.c.l.b16 %v128
    %v340 = vunpack.c.h.b16 %v128
    %v341 = vunpack.c.l.b16 %v129
    %v342 = vunpack.c.h.b16 %v129
    %v343 = vunpack.c.l.b16 %v130
    %v344 = vunpack.c.h.b16 %v130
    %v345 = vunpack.c.l.b16 %v131
    %v346 = vunpack.c.h.b16 %v131
    %v347 = vunpack.c.l.b16 %v132
    %v348 = vunpack.c.h.b16 %v132
    %v349 = vunpack.c.l.b16 %v133
    %v350 = vunpack.c.h.b16 %v133
    %v351 = vunpack.c.l.b16 %v134
    %v352 = vunpack.c.h.b16 %v134
    %v353 = vunpack.c.l.b16 %v135
    %v354 = vunpack.c.h.b16 %v135
    %v355 = vunpack.c.l.b16 %v136
    %v356 = vunpack.c.h.b16 %v136
    %v357 = vunpack.c.l.b16 %v137
    %v358 = vunpack.c.h.b16 %v137
    %v359 = vunpack.c.l.b16 %v138
    %v360 = vunpack.c.h.b16 %v138
    %v361 = vunpack.c.l.b16 %v139
    %v362 = vunpack.c.h.b16 %v139
    %v363 = vunpack.c.l.b16 %v140
    %v364 = vunpack.c.h.b16 %v140
    %v365 = vunpack.c.l.b16 %v141
    %v366 = vunpack.c.h.b16 %v141
    %v367 = vunpack.c.l.b16 %v142
    %v368 = vunpack.c.h.b16 %v142
    %v369 = vunpack.c.l.b16 %v143
    %v370 = vunpack.c.h.b16 %v143
    %v371 = vunpack.c.l.b16 %v144
    %v372 = vunpack.c.h.b16 %v144
    %v373 = vunpack.c.l.b16 %v145
    %v374 = vunpack.c.h.b16 %v145
    %v375 = vunpack.c.l.b16 %v146
    %v376 = vunpack.c.h.b16 %v146
    %v377 = vunpack.c.l.b16 %v147
    %v378 = vunpack.c.h.b16 %v147
    %v379 = vunpack.c.l.b16 %v148
    %v380 = vunpack.c.h.b16 %v148
    %v381 = vunpack.c.l.b16 %v149
    %v382 = vunpack.c.h.b16 %v149
    %v383 = vunpack.c.l.b16 %v150
    %v384 = vunpack.c.h.b16 %v150
    %v385 = vpack.c.b16 %v265, %v257
    %v386 = vpack.c.b16 %v266, %v258
    %v387 = vpack.c.b16 %v267, %v259
    %v388 = vpack.c.b16 %v268, %v260
    %v389 = vpack.c.b16 %v269, %v261
    %v390 = vpack.c.b16 %v270, %v262
    %v391 = vpack.c.b16 %v271, %v263
    %v392 = vpack.c.b16 %v272, %v264
    %v393 = vpack.c.b16 %v281, %v273
    %v394 = vpack.c.b16 %v282, %v274
    %v395 = vpack.c.b16 %v283, %v275
    %v396 = vpack.c.b16 %v284, %v276
    %v397 = vpack.c.b16 %v285, %v277
    %v398 = vpack.c.b16 %v286, %v278
    %v399 = vpack.c.b16 %v287, %v279
    %v400 = vpack.c.b16 %v288, %v280
    %v401 = vpack.c.b16 %v297, %v289
    %v402 = vpack.c.b16 %v298, %v290
    %v403 = vpack.c.b16 %v299, %v291
    %v404 = vpack.c.b16 %v300, %v292
    %v405 = vpack.c.b16 %v301, %v293
    %v406 = vpack.c.b16 %v302, %v294
    %v407 = vpack.c.b16 %v303, %v295
    %v408 = vpack.c.b16 %v304, %v296
    %v409 = vpack.c.b16 %v313, %v305
    %v410 = vpack.c.b16 %v314, %v306
    %v411 = vpack.c.b16 %v315, %v307
    %v412 = vpack.c.b16 %v316, %v308
    %v413 = vpack.c.b16 %v317, %v309
    %v414 = vpack.c.b16 %v318, %v310
    %v415 = vpack.c.b16 %v319, %v311
    %v416 = vpack.c.b16 %v320, %v312
    %v417 = vpack.c.b16 %v329, %v321
    %v418 = vpack.c.b16 %v330, %v322
    %v419 = vpack.c.b16 %v331, %v323
    %v420 = vpack.c.b16 %v332, %v324
    %v421 = vpack.c.b16 %v333, %v325
    %v422 = vpack.c.b16 %v334, %v326
    %v423 = vpack.c.b16 %v335, %v327
    %v424 = vpack.c.b16 %v336, %v328
    %v425 = vpack.c.b16 %v345, %v337
    %v426 = vpack.c.b16 %v346, %v338
    %v427 = vpack.c.b16 %v347, %v339
    %v428 = vpack.c.b16 %v348, %v340
    %v429 = vpack.c.b16 %v349, %v341
    %v430 = vpack.c.b16 %v350, %v342
    %v431 = vpack.c.b16 %v351, %v343
    %v432 = vpack.c.b16 %v352, %v344
    %v433 = vpack.c.b16 %v361, %v353
    %v434 = vpack.c.b16 %v362, %v354
    %v435 = vpack.c.b16 %v363, %v355
    %v436 = vpack.c.b16 %v364, %v356
    %v437 = vpack.c.b16 %v365, %v357
    %v438 = vpack.c.b16 %v366, %v358
    %v439 = vpack.c.b16 %v367, %v359
    %v440 = vpack.c.b16 %v368, %v360
    %v441 = vpack.c.b16 %v377, %v369
    %v442 = vpack.c.b16 %v378, %v370
    %v443 = vpack.c.b16 %v379, %v371
    %v444 = vpack.c.b16 %v380, %v372
    %v445 = vpack.c.b16 %v381, %v373
    %v446 = vpack.c.b16 %v382, %v374
    %v447 = vpack.c.b16 %v383, %v375
    %v448 = vpack.c.b16 %v384, %v376
    %513 = vmatprep.subr.bf16.mxu0 %v386
    %514 = vmatpush1.bf16.msra.mxu0 %v385
    %515 = vmatprep.subr.bf16.mxu0 %v394
    %516 = vmatpush1.bf16.msra.mxu0 %v393
    %517 = vmatprep.subr.bf16.mxu0 %v402
    %518 = vmatpush1.bf16.msra.mxu0 %v401
    %519 = vmatprep.subr.bf16.mxu0 %v410
    %520 = vmatpush1.bf16.msra.mxu0 %v409
    %521 = vmatprep.subr.bf16.mxu0 %v418
    %522 = vmatpush1.bf16.msra.mxu0 %v417
    %523 = vmatprep.subr.bf16.mxu0 %v426
    %524 = vmatpush1.bf16.msra.mxu0 %v425
    %525 = vmatprep.subr.bf16.mxu0 %v434
    %526 = vmatpush1.bf16.msra.mxu0 %v433
    %527 = vmatprep.subr.bf16.mxu0 %v442
    %528 = vmatpush1.bf16.msra.mxu0 %v441
    %529 = vmatprep.subr.bf16.mxu0 0
    %530 = vmatpush1.bf16.msra.mxu0 0
    %531 = vmatprep.subr.bf16.mxu0 0
    %532 = vmatpush1.bf16.msra.mxu0 0
    %533 = vmatprep.subr.bf16.mxu0 0
    %534 = vmatpush1.bf16.msra.mxu0 0
    %535 = vmatprep.subr.bf16.mxu0 0
    %536 = vmatpush1.bf16.msra.mxu0 0
    %537 = vmatprep.subr.bf16.mxu0 0
    %538 = vmatpush1.bf16.msra.mxu0 0
    %539 = vmatprep.subr.bf16.mxu0 0
    %540 = vmatpush1.bf16.msra.mxu0 0
    %541 = vmatprep.subr.bf16.mxu0 0
    %542 = vmatpush1.bf16.msra.mxu0 0
    %543 = vmatprep.subr.bf16.mxu0 0
    %544 = vmatpush1.bf16.msra.mxu0 0
    %545 = vmatprep.mubr.bf16.mxu0 0
    %546 = vmatmul.mubr.bf16.gmra.mrb[0].mxu0 %v86
    %v547 = vpop.f32.mrb[0].mxu0
    %v548 = vadd.f32 %v156, %v547
    %v549 = vpop.f32.mrb[0].mxu0
    %v550 = vadd.f32 %v160, %v549
    %v551 = vpop.f32.mrb[0].mxu0
    %v552 = vpop.f32.mrb[0].mxu0
    %553 = vdwg.mxu0
    %554 = vmatprep.subr.bf16.mxu0 %v388
    %555 = vmatpush1.bf16.msra.mxu0 %v387
    %556 = vmatprep.subr.bf16.mxu0 %v396
    %557 = vmatpush1.bf16.msra.mxu0 %v395
    %558 = vmatprep.subr.bf16.mxu0 %v404
    %559 = vmatpush1.bf16.msra.mxu0 %v403
    %560 = vmatprep.subr.bf16.mxu0 %v412
    %561 = vmatpush1.bf16.msra.mxu0 %v411
    %562 = vmatprep.subr.bf16.mxu0 %v420
    %563 = vmatpush1.bf16.msra.mxu0 %v419
    %564 = vmatprep.subr.bf16.mxu0 %v428
    %565 = vmatpush1.bf16.msra.mxu0 %v427
    %566 = vmatprep.subr.bf16.mxu0 %v436
    %567 = vmatpush1.bf16.msra.mxu0 %v435
    %568 = vmatprep.subr.bf16.mxu0 %v444
    %569 = vmatpush1.bf16.msra.mxu0 %v443
    %570 = vmatprep.subr.bf16.mxu0 0
    %571 = vmatpush1.bf16.msra.mxu0 0
    %572 = vmatprep.subr.bf16.mxu0 0
    %573 = vmatpush1.bf16.msra.mxu0 0
    %574 = vmatprep.subr.bf16.mxu0 0
    %575 = vmatpush1.bf16.msra.mxu0 0
    %576 = vmatprep.subr.bf16.mxu0 0
    %577 = vmatpush1.bf16.msra.mxu0 0
    %578 = vmatprep.subr.bf16.mxu0 0
    %579 = vmatpush1.bf16.msra.mxu0 0
    %580 = vmatprep.subr.bf16.mxu0 0
    %581 = vmatpush1.bf16.msra.mxu0 0
    %582 = vmatprep.subr.bf16.mxu0 0
    %583 = vmatpush1.bf16.msra.mxu0 0
    %584 = vmatprep.subr.bf16.mxu0 0
    %585 = vmatpush1.bf16.msra.mxu0 0
    %586 = vmatprep.mubr.bf16.mxu0 0
    %587 = vmatmul.mubr.bf16.gmra.mrb[0].mxu0 %v86
    %v588 = vpop.f32.mrb[0].mxu0
    %v589 = vadd.f32 %v164, %v588
    %v590 = vpop.f32.mrb[0].mxu0
    %v591 = vadd.f32 %v168, %v590
    %v592 = vpop.f32.mrb[0].mxu0
    %v593 = vpop.f32.mrb[0].mxu0
    %594 = vdwg.mxu0
    %595 = vmatprep.subr.bf16.mxu0 %v390
    %596 = vmatpush1.bf16.msra.mxu0 %v389
    %597 = vmatprep.subr.bf16.mxu0 %v398
    %598 = vmatpush1.bf16.msra.mxu0 %v397
    %599 = vmatprep.subr.bf16.mxu0 %v406
    %600 = vmatpush1.bf16.msra.mxu0 %v405
    %601 = vmatprep.subr.bf16.mxu0 %v414
    %602 = vmatpush1.bf16.msra.mxu0 %v413
    %603 = vmatprep.subr.bf16.mxu0 %v422
    %604 = vmatpush1.bf16.msra.mxu0 %v421
    %605 = vmatprep.subr.bf16.mxu0 %v430
    %606 = vmatpush1.bf16.msra.mxu0 %v429
    %607 = vmatprep.subr.bf16.mxu0 %v438
    %608 = vmatpush1.bf16.msra.mxu0 %v437
    %609 = vmatprep.subr.bf16.mxu0 %v446
    %610 = vmatpush1.bf16.msra.mxu0 %v445
    %611 = vmatprep.subr.bf16.mxu0 0
    %612 = vmatpush1.bf16.msra.mxu0 0
    %613 = vmatprep.subr.bf16.mxu0 0
    %614 = vmatpush1.bf16.msra.mxu0 0
    %615 = vmatprep.subr.bf16.mxu0 0
    %616 = vmatpush1.bf16.msra.mxu0 0
    %617 = vmatprep.subr.bf16.mxu0 0
    %618 = vmatpush1.bf16.msra.mxu0 0
    %619 = vmatprep.subr.bf16.mxu0 0
    %620 = vmatpush1.bf16.msra.mxu0 0
    %621 = vmatprep.subr.bf16.mxu0 0
    %622 = vmatpush1.bf16.msra.mxu0 0
    %623 = vmatprep.subr.bf16.mxu0 0
    %624 = vmatpush1.bf16.msra.mxu0 0
    %625 = vmatprep.subr.bf16.mxu0 0
    %626 = vmatpush1.bf16.msra.mxu0 0
    %627 = vmatprep.mubr.bf16.mxu0 0
    %628 = vmatmul.mubr.bf16.gmra.mrb[0].mxu0 %v86
    %v629 = vpop.f32.mrb[0].mxu0
    %v630 = vadd.f32 %v172, %v629
    %v631 = vpop.f32.mrb[0].mxu0
    %v632 = vadd.f32 %v176, %v631
    %v633 = vpop.f32.mrb[0].mxu0
    %v634 = vpop.f32.mrb[0].mxu0
    %635 = vdwg.mxu0
    %636 = vmatprep.subr.bf16.mxu0 %v392
    %637 = vmatpush1.bf16.msra.mxu0 %v391
    %638 = vmatprep.subr.bf16.mxu0 %v400
    %639 = vmatpush1.bf16.msra.mxu0 %v399
    %640 = vmatprep.subr.bf16.mxu0 %v408
    %641 = vmatpush1.bf16.msra.mxu0 %v407
    %642 = vmatprep.subr.bf16.mxu0 %v416
    %643 = vmatpush1.bf16.msra.mxu0 %v415
    %644 = vmatprep.subr.bf16.mxu0 %v424
    %645 = vmatpush1.bf16.msra.mxu0 %v423
    %646 = vmatprep.subr.bf16.mxu0 %v432
    %647 = vmatpush1.bf16.msra.mxu0 %v431
    %648 = vmatprep.subr.bf16.mxu0 %v440
    %649 = vmatpush1.bf16.msra.mxu0 %v439
    %650 = vmatprep.subr.bf16.mxu0 %v448
    %651 = vmatpush1.bf16.msra.mxu0 %v447
    %652 = vmatprep.subr.bf16.mxu0 0
    %653 = vmatpush1.bf16.msra.mxu0 0
    %654 = vmatprep.subr.bf16.mxu0 0
    %655 = vmatpush1.bf16.msra.mxu0 0
    %656 = vmatprep.subr.bf16.mxu0 0
    %657 = vmatpush1.bf16.msra.mxu0 0
    %658 = vmatprep.subr.bf16.mxu0 0
    %659 = vmatpush1.bf16.msra.mxu0 0
    %660 = vmatprep.subr.bf16.mxu0 0
    %661 = vmatpush1.bf16.msra.mxu0 0
    %662 = vmatprep.subr.bf16.mxu0 0
    %663 = vmatpush1.bf16.msra.mxu0 0
    %664 = vmatprep.subr.bf16.mxu0 0
    %665 = vmatpush1.bf16.msra.mxu0 0
    %666 = vmatprep.subr.bf16.mxu0 0
    %667 = vmatpush1.bf16.msra.mxu0 0
    %668 = vmatprep.mubr.bf16.mxu0 0
    %669 = vmatmul.mubr.bf16.gmra.mrb[0].mxu0 %v86
    %v670 = vpop.f32.mrb[0].mxu0
    %v671 = vadd.f32 %v180, %v670
    %v672 = vpop.f32.mrb[0].mxu0
    %v673 = vadd.f32 %v184, %v672
    %v674 = vpop.f32.mrb[0].mxu0
    %v675 = vpop.f32.mrb[0].mxu0
    %676 = vdwg.mxu0
    %v685 = vcombine.low %v548, %v550
    %v686 = vcombine.low %v589, %v591
    %v687 = vcombine.low %v630, %v632
    %v688 = vcombine.low %v671, %v673
    %693 = vst [vmem:[#allocation2] sm:$0xff] %v685
    %694 = vst [vmem:[#allocation2 + $0x8] sm:$0xff] %v686
    %695 = vst [vmem:[#allocation2 + $0x10] sm:$0xff] %v687
    %696 = vst [vmem:[#allocation2 + $0x18] sm:$0xff] %v688
    %v697 = vld [vmem:[#allocation12] sm:$0xff]
    %v698 = vld [vmem:[#allocation12 + $0x8] sm:$0xff]
    %v699 = vld [vmem:[#allocation12 + $0x10] sm:$0xff]
    %v700 = vld [vmem:[#allocation12 + $0x18] sm:$0xff]
    %v701 = vld [vmem:[#allocation12 + $0x20] sm:$0xff]
    %v702 = vld [vmem:[#allocation12 + $0x28] sm:$0xff]
    %v703 = vld [vmem:[#allocation12 + $0x30] sm:$0xff]
    %v704 = vld [vmem:[#allocation12 + $0x38] sm:$0xff]
    %v705 = vld [vmem:[#allocation12 + $0x40] sm:$0xff]
    %v706 = vld [vmem:[#allocation12 + $0x48] sm:$0xff]
    %v707 = vld [vmem:[#allocation12 + $0x50] sm:$0xff]
    %v708 = vld [vmem:[#allocation12 + $0x58] sm:$0xff]
    %v709 = vld [vmem:[#allocation12 + $0x60] sm:$0xff]
    %v710 = vld [vmem:[#allocation12 + $0x68] sm:$0xff]
    %v711 = vld [vmem:[#allocation12 + $0x70] sm:$0xff]
    %v712 = vld [vmem:[#allocation12 + $0x78] sm:$0xff]
    %v713 = vld [vmem:[#allocation12 + $0x80] sm:$0xff]
    %v714 = vld [vmem:[#allocation12 + $0x88] sm:$0xff]
    %v715 = vld [vmem:[#allocation12 + $0x90] sm:$0xff]
    %v716 = vld [vmem:[#allocation12 + $0x98] sm:$0xff]
    %v717 = vld [vmem:[#allocation12 + $0xa0] sm:$0xff]
    %v718 = vld [vmem:[#allocation12 + $0xa8] sm:$0xff]
    %v719 = vld [vmem:[#allocation12 + $0xb0] sm:$0xff]
    %v720 = vld [vmem:[#allocation12 + $0xb8] sm:$0xff]
    %v721 = vld [vmem:[#allocation12 + $0xc0] sm:$0xff]
    %v722 = vld [vmem:[#allocation12 + $0xc8] sm:$0xff]
    %v723 = vld [vmem:[#allocation12 + $0xd0] sm:$0xff]
    %v724 = vld [vmem:[#allocation12 + $0xd8] sm:$0xff]
    %v725 = vld [vmem:[#allocation12 + $0xe0] sm:$0xff]
    %v726 = vld [vmem:[#allocation12 + $0xe8] sm:$0xff]
    %v727 = vld [vmem:[#allocation12 + $0xf0] sm:$0xff]
    %v728 = vld [vmem:[#allocation12 + $0xf8] sm:$0xff]
    %v729 = vld [vmem:[#allocation12 + $0x100] sm:$0xff]
    %v730 = vld [vmem:[#allocation12 + $0x108] sm:$0xff]
    %v731 = vld [vmem:[#allocation12 + $0x110] sm:$0xff]
    %v732 = vld [vmem:[#allocation12 + $0x118] sm:$0xff]
    %v733 = vld [vmem:[#allocation12 + $0x120] sm:$0xff]
    %v734 = vld [vmem:[#allocation12 + $0x128] sm:$0xff]
    %v735 = vld [vmem:[#allocation12 + $0x130] sm:$0xff]
    %v736 = vld [vmem:[#allocation12 + $0x138] sm:$0xff]
    %v737 = vld [vmem:[#allocation12 + $0x140] sm:$0xff]
    %v738 = vld [vmem:[#allocation12 + $0x148] sm:$0xff]
    %v739 = vld [vmem:[#allocation12 + $0x150] sm:$0xff]
    %v740 = vld [vmem:[#allocation12 + $0x158] sm:$0xff]
    %v741 = vld [vmem:[#allocation12 + $0x160] sm:$0xff]
    %v742 = vld [vmem:[#allocation12 + $0x168] sm:$0xff]
    %v743 = vld [vmem:[#allocation12 + $0x170] sm:$0xff]
    %v744 = vld [vmem:[#allocation12 + $0x178] sm:$0xff]
    %v745 = vld [vmem:[#allocation12 + $0x180] sm:$0xff]
    %v746 = vld [vmem:[#allocation12 + $0x188] sm:$0xff]
    %v747 = vld [vmem:[#allocation12 + $0x190] sm:$0xff]
    %v748 = vld [vmem:[#allocation12 + $0x198] sm:$0xff]
    %v749 = vld [vmem:[#allocation12 + $0x1a0] sm:$0xff]
    %v750 = vld [vmem:[#allocation12 + $0x1a8] sm:$0xff]
    %v751 = vld [vmem:[#allocation12 + $0x1b0] sm:$0xff]
    %v752 = vld [vmem:[#allocation12 + $0x1b8] sm:$0xff]
    %v753 = vld [vmem:[#allocation12 + $0x1c0] sm:$0xff]
    %v754 = vld [vmem:[#allocation12 + $0x1c8] sm:$0xff]
    %v755 = vld [vmem:[#allocation12 + $0x1d0] sm:$0xff]
    %v756 = vld [vmem:[#allocation12 + $0x1d8] sm:$0xff]
    %v757 = vld [vmem:[#allocation12 + $0x1e0] sm:$0xff]
    %v758 = vld [vmem:[#allocation12 + $0x1e8] sm:$0xff]
    %v759 = vld [vmem:[#allocation12 + $0x1f0] sm:$0xff]
    %v760 = vld [vmem:[#allocation12 + $0x1f8] sm:$0xff]
    %v761 = vld [vmem:[#allocation12 + $0x200] sm:$0xff]
    %v762 = vld [vmem:[#allocation12 + $0x208] sm:$0xff]
    %v763 = vld [vmem:[#allocation12 + $0x210] sm:$0xff]
    %v764 = vld [vmem:[#allocation12 + $0x218] sm:$0xff]
    %v765 = vld [vmem:[#allocation12 + $0x220] sm:$0xff]
    %v766 = vld [vmem:[#allocation12 + $0x228] sm:$0xff]
    %v767 = vld [vmem:[#allocation12 + $0x230] sm:$0xff]
    %v768 = vld [vmem:[#allocation12 + $0x238] sm:$0xff]
    %v769 = vld [vmem:[#allocation12 + $0x240] sm:$0xff]
    %v770 = vld [vmem:[#allocation12 + $0x248] sm:$0xff]
    %v771 = vld [vmem:[#allocation12 + $0x250] sm:$0xff]
    %v772 = vld [vmem:[#allocation12 + $0x258] sm:$0xff]
    %v773 = vld [vmem:[#allocation12 + $0x260] sm:$0xff]
    %v774 = vld [vmem:[#allocation12 + $0x268] sm:$0xff]
    %v775 = vld [vmem:[#allocation12 + $0x270] sm:$0xff]
    %v776 = vld [vmem:[#allocation12 + $0x278] sm:$0xff]
    %v777 = vld [vmem:[#allocation12 + $0x280] sm:$0xff]
    %v778 = vld [vmem:[#allocation12 + $0x288] sm:$0xff]
    %v779 = vld [vmem:[#allocation12 + $0x290] sm:$0xff]
    %v780 = vld [vmem:[#allocation12 + $0x298] sm:$0xff]
    %v781 = vld [vmem:[#allocation12 + $0x2a0] sm:$0xff]
    %v782 = vld [vmem:[#allocation12 + $0x2a8] sm:$0xff]
    %v783 = vld [vmem:[#allocation12 + $0x2b0] sm:$0xff]
    %v784 = vld [vmem:[#allocation12 + $0x2b8] sm:$0xff]
    %v785 = vld [vmem:[#allocation12 + $0x2c0] sm:$0xff]
    %v786 = vld [vmem:[#allocation12 + $0x2c8] sm:$0xff]
    %v787 = vld [vmem:[#allocation12 + $0x2d0] sm:$0xff]
    %v788 = vld [vmem:[#allocation12 + $0x2d8] sm:$0xff]
    %v789 = vld [vmem:[#allocation12 + $0x2e0] sm:$0xff]
    %v790 = vld [vmem:[#allocation12 + $0x2e8] sm:$0xff]
    %v791 = vld [vmem:[#allocation12 + $0x2f0] sm:$0xff]
    %v792 = vld [vmem:[#allocation12 + $0x2f8] sm:$0xff]
    %v793 = vld [vmem:[#allocation12 + $0x300] sm:$0xff]
    %v794 = vld [vmem:[#allocation12 + $0x308] sm:$0xff]
    %v795 = vld [vmem:[#allocation12 + $0x310] sm:$0xff]
    %v796 = vld [vmem:[#allocation12 + $0x318] sm:$0xff]
    %v797 = vld [vmem:[#allocation12 + $0x320] sm:$0xff]
    %v798 = vld [vmem:[#allocation12 + $0x328] sm:$0xff]
    %v799 = vld [vmem:[#allocation12 + $0x330] sm:$0xff]
    %v800 = vld [vmem:[#allocation12 + $0x338] sm:$0xff]
    %v801 = vld [vmem:[#allocation12 + $0x340] sm:$0xff]
    %v802 = vld [vmem:[#allocation12 + $0x348] sm:$0xff]
    %v803 = vld [vmem:[#allocation12 + $0x350] sm:$0xff]
    %v804 = vld [vmem:[#allocation12 + $0x358] sm:$0xff]
    %v805 = vld [vmem:[#allocation12 + $0x360] sm:$0xff]
    %v806 = vld [vmem:[#allocation12 + $0x368] sm:$0xff]
    %v807 = vld [vmem:[#allocation12 + $0x370] sm:$0xff]
    %v808 = vld [vmem:[#allocation12 + $0x378] sm:$0xff]
    %v809 = vld [vmem:[#allocation12 + $0x380] sm:$0xff]
    %v810 = vld [vmem:[#allocation12 + $0x388] sm:$0xff]
    %v811 = vld [vmem:[#allocation12 + $0x390] sm:$0xff]
    %v812 = vld [vmem:[#allocation12 + $0x398] sm:$0xff]
    %v813 = vld [vmem:[#allocation12 + $0x3a0] sm:$0xff]
    %v814 = vld [vmem:[#allocation12 + $0x3a8] sm:$0xff]
    %v815 = vld [vmem:[#allocation12 + $0x3b0] sm:$0xff]
    %v816 = vld [vmem:[#allocation12 + $0x3b8] sm:$0xff]
    %v817 = vld [vmem:[#allocation12 + $0x3c0] sm:$0xff]
    %v818 = vld [vmem:[#allocation12 + $0x3c8] sm:$0xff]
    %v819 = vld [vmem:[#allocation12 + $0x3d0] sm:$0xff]
    %v820 = vld [vmem:[#allocation12 + $0x3d8] sm:$0xff]
    %v821 = vld [vmem:[#allocation12 + $0x3e0] sm:$0xff]
    %v822 = vld [vmem:[#allocation12 + $0x3e8] sm:$0xff]
    %v823 = vld [vmem:[#allocation12 + $0x3f0] sm:$0xff]
    %v824 = vld [vmem:[#allocation12 + $0x3f8] sm:$0xff]
    %v825 = vld [vmem:[#allocation2] ss:$4 sm:$0xff]
    %v826 = vxor.u32 %v825, 2147483648
    %v827 = vmul.f32 %v826, 1.442695
    %v828 = vpow.pop %v827
    %v829 = vadd.f32 %v828, 1.0
    %v830 = vrcp.pop %v829
    %v831 = vmul.f32 1.0, %v830
    %v833 = vrot.slane %v825, 2
    %v835 = vxor.u32 %v833, 2147483648
    %v836 = vmul.f32 %v835, 1.442695
    %v837 = vpow.pop %v836
    %v838 = vadd.f32 %v837, 1.0
    %v839 = vrcp.pop %v838
    %v840 = vmul.f32 1.0, %v839
    %v841 = vrot.slane %v825, 4
    %v843 = vtanh.pop %v841
    %v844 = vrot.slane %v825, 6
    %v846 = vxor.u32 %v844, 2147483648
    %v847 = vmul.f32 %v846, 1.442695
    %v848 = vpow.pop %v847
    %v849 = vadd.f32 %v848, 1.0
    %v850 = vrcp.pop %v849
    %v851 = vmul.f32 1.0, %v850
    %v852 = vmul.f32 %v840, 0.0
    %v853 = vmul.f32 %v831, %v843
    %v854 = vadd.f32 %v852, %v853
    %v855 = vtanh.pop %v854
    %v856 = vmul.f32 %v851, %v855
    %v857 = vpack.c.bf16 %v856, %v856
    %v858 = vpack.c.bf16 0.0, 0.0
    %s859 = scalar_lea.vmem [#allocation2], 1
    %v860 = vld [vmem:[%s859] ss:$4 sm:$0xff]
    %v989 = vunpack.c.l.b16 %v697
    %v990 = vunpack.c.h.b16 %v697
    %v991 = vunpack.c.l.b16 %v698
    %v992 = vunpack.c.h.b16 %v698
    %v993 = vunpack.c.l.b16 %v699
    %v994 = vunpack.c.h.b16 %v699
    %v995 = vunpack.c.l.b16 %v700
    %v996 = vunpack.c.h.b16 %v700
    %v997 = vunpack.c.l.b16 %v701
    %v998 = vunpack.c.h.b16 %v701
    %v999 = vunpack.c.l.b16 %v702
    %v1000 = vunpack.c.h.b16 %v702
    %v1001 = vunpack.c.l.b16 %v703
    %v1002 = vunpack.c.h.b16 %v703
    %v1003 = vunpack.c.l.b16 %v704
    %v1004 = vunpack.c.h.b16 %v704
    %v1005 = vunpack.c.l.b16 %v705
    %v1006 = vunpack.c.h.b16 %v705
    %v1007 = vunpack.c.l.b16 %v706
    %v1008 = vunpack.c.h.b16 %v706
    %v1009 = vunpack.c.l.b16 %v707
    %v1010 = vunpack.c.h.b16 %v707
    %v1011 = vunpack.c.l.b16 %v708
    %v1012 = vunpack.c.h.b16 %v708
    %v1013 = vunpack.c.l.b16 %v709
    %v1014 = vunpack.c.h.b16 %v709
    %v1015 = vunpack.c.l.b16 %v710
    %v1016 = vunpack.c.h.b16 %v710
    %v1017 = vunpack.c.l.b16 %v711
    %v1018 = vunpack.c.h.b16 %v711
    %v1019 = vunpack.c.l.b16 %v712
    %v1020 = vunpack.c.h.b16 %v712
    %v1021 = vunpack.c.l.b16 %v713
    %v1022 = vunpack.c.h.b16 %v713
    %v1023 = vunpack.c.l.b16 %v714
    %v1024 = vunpack.c.h.b16 %v714
    %v1025 = vunpack.c.l.b16 %v715
    %v1026 = vunpack.c.h.b16 %v715
    %v1027 = vunpack.c.l.b16 %v716
    %v1028 = vunpack.c.h.b16 %v716
    %v1029 = vunpack.c.l.b16 %v717
    %v1030 = vunpack.c.h.b16 %v717
    %v1031 = vunpack.c.l.b16 %v718
    %v1032 = vunpack.c.h.b16 %v718
    %v1033 = vunpack.c.l.b16 %v719
    %v1034 = vunpack.c.h.b16 %v719
    %v1035 = vunpack.c.l.b16 %v720
    %v1036 = vunpack.c.h.b16 %v720
    %v1037 = vunpack.c.l.b16 %v721
    %v1038 = vunpack.c.h.b16 %v721
    %v1039 = vunpack.c.l.b16 %v722
    %v1040 = vunpack.c.h.b16 %v722
    %v1041 = vunpack.c.l.b16 %v723
    %v1042 = vunpack.c.h.b16 %v723
    %v1043 = vunpack.c.l.b16 %v724
    %v1044 = vunpack.c.h.b16 %v724
    %v1045 = vunpack.c.l.b16 %v725
    %v1046 = vunpack.c.h.b16 %v725
    %v1047 = vunpack.c.l.b16 %v726
    %v1048 = vunpack.c.h.b16 %v726
    %v1049 = vunpack.c.l.b16 %v727
    %v1050 = vunpack.c.h.b16 %v727
    %v1051 = vunpack.c.l.b16 %v728
    %v1052 = vunpack.c.h.b16 %v728
    %v1053 = vunpack.c.l.b16 %v729
    %v1054 = vunpack.c.h.b16 %v729
    %v1055 = vunpack.c.l.b16 %v730
    %v1056 = vunpack.c.h.b16 %v730
    %v1057 = vunpack.c.l.b16 %v731
    %v1058 = vunpack.c.h.b16 %v731
    %v1059 = vunpack.c.l.b16 %v732
    %v1060 = vunpack.c.h.b16 %v732
    %v1061 = vunpack.c.l.b16 %v733
    %v1062 = vunpack.c.h.b16 %v733
    %v1063 = vunpack.c.l.b16 %v734
    %v1064 = vunpack.c.h.b16 %v734
    %v1065 = vunpack.c.l.b16 %v735
    %v1066 = vunpack.c.h.b16 %v735
    %v1067 = vunpack.c.l.b16 %v736
    %v1068 = vunpack.c.h.b16 %v736
    %v1069 = vunpack.c.l.b16 %v737
    %v1070 = vunpack.c.h.b16 %v737
    %v1071 = vunpack.c.l.b16 %v738
    %v1072 = vunpack.c.h.b16 %v738
    %v1073 = vunpack.c.l.b16 %v739
    %v1074 = vunpack.c.h.b16 %v739
    %v1075 = vunpack.c.l.b16 %v740
    %v1076 = vunpack.c.h.b16 %v740
    %v1077 = vunpack.c.l.b16 %v741
    %v1078 = vunpack.c.h.b16 %v741
    %v1079 = vunpack.c.l.b16 %v742
    %v1080 = vunpack.c.h.b16 %v742
    %v1081 = vunpack.c.l.b16 %v743
    %v1082 = vunpack.c.h.b16 %v743
    %v1083 = vunpack.c.l.b16 %v744
    %v1084 = vunpack.c.h.b16 %v744
    %v1085 = vunpack.c.l.b16 %v745
    %v1086 = vunpack.c.h.b16 %v745
    %v1087 = vunpack.c.l.b16 %v746
    %v1088 = vunpack.c.h.b16 %v746
    %v1089 = vunpack.c.l.b16 %v747
    %v1090 = vunpack.c.h.b16 %v747
    %v1091 = vunpack.c.l.b16 %v748
    %v1092 = vunpack.c.h.b16 %v748
    %v1093 = vunpack.c.l.b16 %v749
    %v1094 = vunpack.c.h.b16 %v749
    %v1095 = vunpack.c.l.b16 %v750
    %v1096 = vunpack.c.h.b16 %v750
    %v1097 = vunpack.c.l.b16 %v751
    %v1098 = vunpack.c.h.b16 %v751
    %v1099 = vunpack.c.l.b16 %v752
    %v1100 = vunpack.c.h.b16 %v752
    %v1101 = vunpack.c.l.b16 %v753
    %v1102 = vunpack.c.h.b16 %v753
    %v1103 = vunpack.c.l.b16 %v754
    %v1104 = vunpack.c.h.b16 %v754
    %v1105 = vunpack.c.l.b16 %v755
    %v1106 = vunpack.c.h.b16 %v755
    %v1107 = vunpack.c.l.b16 %v756
    %v1108 = vunpack.c.h.b16 %v756
    %v1109 = vunpack.c.l.b16 %v757
    %v1110 = vunpack.c.h.b16 %v757
    %v1111 = vunpack.c.l.b16 %v758
    %v1112 = vunpack.c.h.b16 %v758
    %v1113 = vunpack.c.l.b16 %v759
    %v1114 = vunpack.c.h.b16 %v759
    %v1115 = vunpack.c.l.b16 %v760
    %v1116 = vunpack.c.h.b16 %v760
    %v1117 = vunpack.c.l.b16 %v761
    %v1118 = vunpack.c.h.b16 %v761
    %v1119 = vunpack.c.l.b16 %v762
    %v1120 = vunpack.c.h.b16 %v762
    %v1121 = vunpack.c.l.b16 %v763
    %v1122 = vunpack.c.h.b16 %v763
    %v1123 = vunpack.c.l.b16 %v764
    %v1124 = vunpack.c.h.b16 %v764
    %v1125 = vunpack.c.l.b16 %v765
    %v1126 = vunpack.c.h.b16 %v765
    %v1127 = vunpack.c.l.b16 %v766
    %v1128 = vunpack.c.h.b16 %v766
    %v1129 = vunpack.c.l.b16 %v767
    %v1130 = vunpack.c.h.b16 %v767
    %v1131 = vunpack.c.l.b16 %v768
    %v1132 = vunpack.c.h.b16 %v768
    %v1133 = vunpack.c.l.b16 %v769
    %v1134 = vunpack.c.h.b16 %v769
    %v1135 = vunpack.c.l.b16 %v770
    %v1136 = vunpack.c.h.b16 %v770
    %v1137 = vunpack.c.l.b16 %v771
    %v1138 = vunpack.c.h.b16 %v771
    %v1139 = vunpack.c.l.b16 %v772
    %v1140 = vunpack.c.h.b16 %v772
    %v1141 = vunpack.c.l.b16 %v773
    %v1142 = vunpack.c.h.b16 %v773
    %v1143 = vunpack.c.l.b16 %v774
    %v1144 = vunpack.c.h.b16 %v774
    %v1145 = vunpack.c.l.b16 %v775
    %v1146 = vunpack.c.h.b16 %v775
    %v1147 = vunpack.c.l.b16 %v776
    %v1148 = vunpack.c.h.b16 %v776
    %v1149 = vunpack.c.l.b16 %v777
    %v1150 = vunpack.c.h.b16 %v777
    %v1151 = vunpack.c.l.b16 %v778
    %v1152 = vunpack.c.h.b16 %v778
    %v1153 = vunpack.c.l.b16 %v779
    %v1154 = vunpack.c.h.b16 %v779
    %v1155 = vunpack.c.l.b16 %v780
    %v1156 = vunpack.c.h.b16 %v780
    %v1157 = vunpack.c.l.b16 %v781
    %v1158 = vunpack.c.h.b16 %v781
    %v1159 = vunpack.c.l.b16 %v782
    %v1160 = vunpack.c.h.b16 %v782
    %v1161 = vunpack.c.l.b16 %v783
    %v1162 = vunpack.c.h.b16 %v783
    %v1163 = vunpack.c.l.b16 %v784
    %v1164 = vunpack.c.h.b16 %v784
    %v1165 = vunpack.c.l.b16 %v785
    %v1166 = vunpack.c.h.b16 %v785
    %v1167 = vunpack.c.l.b16 %v786
    %v1168 = vunpack.c.h.b16 %v786
    %v1169 = vunpack.c.l.b16 %v787
    %v1170 = vunpack.c.h.b16 %v787
    %v1171 = vunpack.c.l.b16 %v788
    %v1172 = vunpack.c.h.b16 %v788
    %v1173 = vunpack.c.l.b16 %v789
    %v1174 = vunpack.c.h.b16 %v789
    %v1175 = vunpack.c.l.b16 %v790
    %v1176 = vunpack.c.h.b16 %v790
    %v1177 = vunpack.c.l.b16 %v791
    %v1178 = vunpack.c.h.b16 %v791
    %v1179 = vunpack.c.l.b16 %v792
    %v1180 = vunpack.c.h.b16 %v792
    %v1181 = vunpack.c.l.b16 %v793
    %v1182 = vunpack.c.h.b16 %v793
    %v1183 = vunpack.c.l.b16 %v794
    %v1184 = vunpack.c.h.b16 %v794
    %v1185 = vunpack.c.l.b16 %v795
    %v1186 = vunpack.c.h.b16 %v795
    %v1187 = vunpack.c.l.b16 %v796
    %v1188 = vunpack.c.h.b16 %v796
    %v1189 = vunpack.c.l.b16 %v797
    %v1190 = vunpack.c.h.b16 %v797
    %v1191 = vunpack.c.l.b16 %v798
    %v1192 = vunpack.c.h.b16 %v798
    %v1193 = vunpack.c.l.b16 %v799
    %v1194 = vunpack.c.h.b16 %v799
    %v1195 = vunpack.c.l.b16 %v800
    %v1196 = vunpack.c.h.b16 %v800
    %v1197 = vunpack.c.l.b16 %v801
    %v1198 = vunpack.c.h.b16 %v801
    %v1199 = vunpack.c.l.b16 %v802
    %v1200 = vunpack.c.h.b16 %v802
    %v1201 = vunpack.c.l.b16 %v803
    %v1202 = vunpack.c.h.b16 %v803
    %v1203 = vunpack.c.l.b16 %v804
    %v1204 = vunpack.c.h.b16 %v804
    %v1205 = vunpack.c.l.b16 %v805
    %v1206 = vunpack.c.h.b16 %v805
    %v1207 = vunpack.c.l.b16 %v806
    %v1208 = vunpack.c.h.b16 %v806
    %v1209 = vunpack.c.l.b16 %v807
    %v1210 = vunpack.c.h.b16 %v807
    %v1211 = vunpack.c.l.b16 %v808
    %v1212 = vunpack.c.h.b16 %v808
    %v1213 = vunpack.c.l.b16 %v809
    %v1214 = vunpack.c.h.b16 %v809
    %v1215 = vunpack.c.l.b16 %v810
    %v1216 = vunpack.c.h.b16 %v810
    %v1217 = vunpack.c.l.b16 %v811
    %v1218 = vunpack.c.h.b16 %v811
    %v1219 = vunpack.c.l.b16 %v812
    %v1220 = vunpack.c.h.b16 %v812
    %v1221 = vunpack.c.l.b16 %v813
    %v1222 = vunpack.c.h.b16 %v813
    %v1223 = vunpack.c.l.b16 %v814
    %v1224 = vunpack.c.h.b16 %v814
    %v1225 = vunpack.c.l.b16 %v815
    %v1226 = vunpack.c.h.b16 %v815
    %v1227 = vunpack.c.l.b16 %v816
    %v1228 = vunpack.c.h.b16 %v816
    %v1229 = vunpack.c.l.b16 %v817
    %v1230 = vunpack.c.h.b16 %v817
    %v1231 = vunpack.c.l.b16 %v818
    %v1232 = vunpack.c.h.b16 %v818
    %v1233 = vunpack.c.l.b16 %v819
    %v1234 = vunpack.c.h.b16 %v819
    %v1235 = vunpack.c.l.b16 %v820
    %v1236 = vunpack.c.h.b16 %v820
    %v1237 = vunpack.c.l.b16 %v821
    %v1238 = vunpack.c.h.b16 %v821
    %v1239 = vunpack.c.l.b16 %v822
    %v1240 = vunpack.c.h.b16 %v822
    %v1241 = vunpack.c.l.b16 %v823
    %v1242 = vunpack.c.h.b16 %v823
    %v1243 = vunpack.c.l.b16 %v824
    %v1244 = vunpack.c.h.b16 %v824
    %v1245 = vpack.c.b16 %v997, %v989
    %v1246 = vpack.c.b16 %v998, %v990
    %v1247 = vpack.c.b16 %v999, %v991
    %v1248 = vpack.c.b16 %v1000, %v992
    %v1249 = vpack.c.b16 %v1001, %v993
    %v1250 = vpack.c.b16 %v1002, %v994
    %v1251 = vpack.c.b16 %v1003, %v995
    %v1252 = vpack.c.b16 %v1004, %v996
    %v1253 = vpack.c.b16 %v1013, %v1005
    %v1254 = vpack.c.b16 %v1014, %v1006
    %v1255 = vpack.c.b16 %v1015, %v1007
    %v1256 = vpack.c.b16 %v1016, %v1008
    %v1257 = vpack.c.b16 %v1017, %v1009
    %v1258 = vpack.c.b16 %v1018, %v1010
    %v1259 = vpack.c.b16 %v1019, %v1011
    %v1260 = vpack.c.b16 %v1020, %v1012
    %v1261 = vpack.c.b16 %v1029, %v1021
    %v1262 = vpack.c.b16 %v1030, %v1022
    %v1263 = vpack.c.b16 %v1031, %v1023
    %v1264 = vpack.c.b16 %v1032, %v1024
    %v1265 = vpack.c.b16 %v1033, %v1025
    %v1266 = vpack.c.b16 %v1034, %v1026
    %v1267 = vpack.c.b16 %v1035, %v1027
    %v1268 = vpack.c.b16 %v1036, %v1028
    %v1269 = vpack.c.b16 %v1045, %v1037
    %v1270 = vpack.c.b16 %v1046, %v1038
    %v1271 = vpack.c.b16 %v1047, %v1039
    %v1272 = vpack.c.b16 %v1048, %v1040
    %v1273 = vpack.c.b16 %v1049, %v1041
    %v1274 = vpack.c.b16 %v1050, %v1042
    %v1275 = vpack.c.b16 %v1051, %v1043
    %v1276 = vpack.c.b16 %v1052, %v1044
    %v1277 = vpack.c.b16 %v1061, %v1053
    %v1278 = vpack.c.b16 %v1062, %v1054
    %v1279 = vpack.c.b16 %v1063, %v1055
    %v1280 = vpack.c.b16 %v1064, %v1056
    %v1281 = vpack.c.b16 %v1065, %v1057
    %v1282 = vpack.c.b16 %v1066, %v1058
    %v1283 = vpack.c.b16 %v1067, %v1059
    %v1284 = vpack.c.b16 %v1068, %v1060
    %v1285 = vpack.c.b16 %v1077, %v1069
    %v1286 = vpack.c.b16 %v1078, %v1070
    %v1287 = vpack.c.b16 %v1079, %v1071
    %v1288 = vpack.c.b16 %v1080, %v1072
    %v1289 = vpack.c.b16 %v1081, %v1073
    %v1290 = vpack.c.b16 %v1082, %v1074
    %v1291 = vpack.c.b16 %v1083, %v1075
    %v1292 = vpack.c.b16 %v1084, %v1076
    %v1293 = vpack.c.b16 %v1093, %v1085
    %v1294 = vpack.c.b16 %v1094, %v1086
    %v1295 = vpack.c.b16 %v1095, %v1087
    %v1296 = vpack.c.b16 %v1096, %v1088
    %v1297 = vpack.c.b16 %v1097, %v1089
    %v1298 = vpack.c.b16 %v1098, %v1090
    %v1299 = vpack.c.b16 %v1099, %v1091
    %v1300 = vpack.c.b16 %v1100, %v1092
    %v1301 = vpack.c.b16 %v1109, %v1101
    %v1302 = vpack.c.b16 %v1110, %v1102
    %v1303 = vpack.c.b16 %v1111, %v1103
    %v1304 = vpack.c.b16 %v1112, %v1104
    %v1305 = vpack.c.b16 %v1113, %v1105
    %v1306 = vpack.c.b16 %v1114, %v1106
    %v1307 = vpack.c.b16 %v1115, %v1107
    %v1308 = vpack.c.b16 %v1116, %v1108
    %v1309 = vpack.c.b16 %v1125, %v1117
    %v1310 = vpack.c.b16 %v1126, %v1118
    %v1311 = vpack.c.b16 %v1127, %v1119
    %v1312 = vpack.c.b16 %v1128, %v1120
    %v1313 = vpack.c.b16 %v1129, %v1121
    %v1314 = vpack.c.b16 %v1130, %v1122
    %v1315 = vpack.c.b16 %v1131, %v1123
    %v1316 = vpack.c.b16 %v1132, %v1124
    %v1317 = vpack.c.b16 %v1141, %v1133
    %v1318 = vpack.c.b16 %v1142, %v1134
    %v1319 = vpack.c.b16 %v1143, %v1135
    %v1320 = vpack.c.b16 %v1144, %v1136
    %v1321 = vpack.c.b16 %v1145, %v1137
    %v1322 = vpack.c.b16 %v1146, %v1138
    %v1323 = vpack.c.b16 %v1147, %v1139
    %v1324 = vpack.c.b16 %v1148, %v1140
    %v1325 = vpack.c.b16 %v1157, %v1149
    %v1326 = vpack.c.b16 %v1158, %v1150
    %v1327 = vpack.c.b16 %v1159, %v1151
    %v1328 = vpack.c.b16 %v1160, %v1152
    %v1329 = vpack.c.b16 %v1161, %v1153
    %v1330 = vpack.c.b16 %v1162, %v1154
    %v1331 = vpack.c.b16 %v1163, %v1155
    %v1332 = vpack.c.b16 %v1164, %v1156
    %v1333 = vpack.c.b16 %v1173, %v1165
    %v1334 = vpack.c.b16 %v1174, %v1166
    %v1335 = vpack.c.b16 %v1175, %v1167
    %v1336 = vpack.c.b16 %v1176, %v1168
    %v1337 = vpack.c.b16 %v1177, %v1169
    %v1338 = vpack.c.b16 %v1178, %v1170
    %v1339 = vpack.c.b16 %v1179, %v1171
    %v1340 = vpack.c.b16 %v1180, %v1172
    %v1341 = vpack.c.b16 %v1189, %v1181
    %v1342 = vpack.c.b16 %v1190, %v1182
    %v1343 = vpack.c.b16 %v1191, %v1183
    %v1344 = vpack.c.b16 %v1192, %v1184
    %v1345 = vpack.c.b16 %v1193, %v1185
    %v1346 = vpack.c.b16 %v1194, %v1186
    %v1347 = vpack.c.b16 %v1195, %v1187
    %v1348 = vpack.c.b16 %v1196, %v1188
    %v1349 = vpack.c.b16 %v1205, %v1197
    %v1350 = vpack.c.b16 %v1206, %v1198
    %v1351 = vpack.c.b16 %v1207, %v1199
    %v1352 = vpack.c.b16 %v1208, %v1200
    %v1353 = vpack.c.b16 %v1209, %v1201
    %v1354 = vpack.c.b16 %v1210, %v1202
    %v1355 = vpack.c.b16 %v1211, %v1203
    %v1356 = vpack.c.b16 %v1212, %v1204
    %v1357 = vpack.c.b16 %v1221, %v1213
    %v1358 = vpack.c.b16 %v1222, %v1214
    %v1359 = vpack.c.b16 %v1223, %v1215
    %v1360 = vpack.c.b16 %v1224, %v1216
    %v1361 = vpack.c.b16 %v1225, %v1217
    %v1362 = vpack.c.b16 %v1226, %v1218
    %v1363 = vpack.c.b16 %v1227, %v1219
    %v1364 = vpack.c.b16 %v1228, %v1220
    %v1365 = vpack.c.b16 %v1237, %v1229
    %v1366 = vpack.c.b16 %v1238, %v1230
    %v1367 = vpack.c.b16 %v1239, %v1231
    %v1368 = vpack.c.b16 %v1240, %v1232
    %v1369 = vpack.c.b16 %v1241, %v1233
    %v1370 = vpack.c.b16 %v1242, %v1234
    %v1371 = vpack.c.b16 %v1243, %v1235
    %v1372 = vpack.c.b16 %v1244, %v1236
    %v1502 = vlaneseq
    %v1503 = vshrl.u32 %v1502, 7
    %v1504 = vsub.s32 0, %v1503
    %v1505 = vrot.slane %v860, %v1504
    %v1506 = vlaneseq
    %v1507 = vshrl.u32 %v1506, 7
    %v1508 = vsub.s32 1, %v1507
    %v1509 = vrot.slane %v860, %v1508
    %v1510 = vlaneseq
    %v1511 = vshrl.u32 %v1510, 7
    %v1512 = vsub.s32 2, %v1511
    %v1513 = vrot.slane %v860, %v1512
    %v1514 = vlaneseq
    %v1515 = vshrl.u32 %v1514, 7
    %v1516 = vsub.s32 3, %v1515
    %v1517 = vrot.slane %v860, %v1516
    %v1518 = vlaneseq
    %v1519 = vshrl.u32 %v1518, 7
    %v1520 = vsub.s32 4, %v1519
    %v1521 = vrot.slane %v860, %v1520
    %v1522 = vlaneseq
    %v1523 = vshrl.u32 %v1522, 7
    %v1524 = vsub.s32 5, %v1523
    %v1525 = vrot.slane %v860, %v1524
    %v1526 = vlaneseq
    %v1527 = vshrl.u32 %v1526, 7
    %v1528 = vsub.s32 6, %v1527
    %v1529 = vrot.slane %v860, %v1528
    %v1530 = vlaneseq
    %v1531 = vshrl.u32 %v1530, 7
    %v1532 = vsub.s32 7, %v1531
    %v1533 = vrot.slane %v860, %v1532
    %1542 = vmatprep.subr.bf16.mxu0 %v1246
    %1543 = vmatpush1.bf16.msra.mxu0 %v1245
    %1544 = vmatprep.subr.bf16.mxu0 %v1254
    %1545 = vmatpush1.bf16.msra.mxu0 %v1253
    %1546 = vmatprep.subr.bf16.mxu0 %v1262
    %1547 = vmatpush1.bf16.msra.mxu0 %v1261
    %1548 = vmatprep.subr.bf16.mxu0 %v1270
    %1549 = vmatpush1.bf16.msra.mxu0 %v1269
    %1550 = vmatprep.subr.bf16.mxu0 %v1278
    %1551 = vmatpush1.bf16.msra.mxu0 %v1277
    %1552 = vmatprep.subr.bf16.mxu0 %v1286
    %1553 = vmatpush1.bf16.msra.mxu0 %v1285
    %1554 = vmatprep.subr.bf16.mxu0 %v1294
    %1555 = vmatpush1.bf16.msra.mxu0 %v1293
    %1556 = vmatprep.subr.bf16.mxu0 %v1302
    %1557 = vmatpush1.bf16.msra.mxu0 %v1301
    %1558 = vmatprep.subr.bf16.mxu0 %v1310
    %1559 = vmatpush1.bf16.msra.mxu0 %v1309
    %1560 = vmatprep.subr.bf16.mxu0 %v1318
    %1561 = vmatpush1.bf16.msra.mxu0 %v1317
    %1562 = vmatprep.subr.bf16.mxu0 %v1326
    %1563 = vmatpush1.bf16.msra.mxu0 %v1325
    %1564 = vmatprep.subr.bf16.mxu0 %v1334
    %1565 = vmatpush1.bf16.msra.mxu0 %v1333
    %1566 = vmatprep.subr.bf16.mxu0 %v1342
    %1567 = vmatpush1.bf16.msra.mxu0 %v1341
    %1568 = vmatprep.subr.bf16.mxu0 %v1350
    %1569 = vmatpush1.bf16.msra.mxu0 %v1349
    %1570 = vmatprep.subr.bf16.mxu0 %v1358
    %1571 = vmatpush1.bf16.msra.mxu0 %v1357
    %1572 = vmatprep.subr.bf16.mxu0 %v1366
    %1573 = vmatpush1.bf16.msra.mxu0 %v1365
    %1574 = vmatprep.mubr.bf16.mxu0 %v858
    %1575 = vmatmul.mubr.bf16.gmra.mrb[0].mxu0 %v857
    %v1576 = vpop.f32.mrb[0].mxu0
    %v1577 = vadd.f32 %v1505, %v1576
    %v1578 = vpop.f32.mrb[0].mxu0
    %v1579 = vadd.f32 %v1509, %v1578
    %v1580 = vpop.f32.mrb[0].mxu0
    %v1581 = vpop.f32.mrb[0].mxu0
    %1582 = vdwg.mxu0
    %1583 = vmatprep.subr.bf16.mxu0 %v1248
    %1584 = vmatpush1.bf16.msra.mxu0 %v1247
    %1585 = vmatprep.subr.bf16.mxu0 %v1256
    %1586 = vmatpush1.bf16.msra.mxu0 %v1255
    %1587 = vmatprep.subr.bf16.mxu0 %v1264
    %1588 = vmatpush1.bf16.msra.mxu0 %v1263
    %1589 = vmatprep.subr.bf16.mxu0 %v1272
    %1590 = vmatpush1.bf16.msra.mxu0 %v1271
    %1591 = vmatprep.subr.bf16.mxu0 %v1280
    %1592 = vmatpush1.bf16.msra.mxu0 %v1279
    %1593 = vmatprep.subr.bf16.mxu0 %v1288
    %1594 = vmatpush1.bf16.msra.mxu0 %v1287
    %1595 = vmatprep.subr.bf16.mxu0 %v1296
    %1596 = vmatpush1.bf16.msra.mxu0 %v1295
    %1597 = vmatprep.subr.bf16.mxu0 %v1304
    %1598 = vmatpush1.bf16.msra.mxu0 %v1303
    %1599 = vmatprep.subr.bf16.mxu0 %v1312
    %1600 = vmatpush1.bf16.msra.mxu0 %v1311
    %1601 = vmatprep.subr.bf16.mxu0 %v1320
    %1602 = vmatpush1.bf16.msra.mxu0 %v1319
    %1603 = vmatprep.subr.bf16.mxu0 %v1328
    %1604 = vmatpush1.bf16.msra.mxu0 %v1327
    %1605 = vmatprep.subr.bf16.mxu0 %v1336
    %1606 = vmatpush1.bf16.msra.mxu0 %v1335
    %1607 = vmatprep.subr.bf16.mxu0 %v1344
    %1608 = vmatpush1.bf16.msra.mxu0 %v1343
    %1609 = vmatprep.subr.bf16.mxu0 %v1352
    %1610 = vmatpush1.bf16.msra.mxu0 %v1351
    %1611 = vmatprep.subr.bf16.mxu0 %v1360
    %1612 = vmatpush1.bf16.msra.mxu0 %v1359
    %1613 = vmatprep.subr.bf16.mxu0 %v1368
    %1614 = vmatpush1.bf16.msra.mxu0 %v1367
    %1615 = vmatprep.mubr.bf16.mxu0 %v858
    %1616 = vmatmul.mubr.bf16.gmra.mrb[0].mxu0 %v857
    %v1617 = vpop.f32.mrb[0].mxu0
    %v1618 = vadd.f32 %v1513, %v1617
    %v1619 = vpop.f32.mrb[0].mxu0
    %v1620 = vadd.f32 %v1517, %v1619
    %v1621 = vpop.f32.mrb[0].mxu0
    %v1622 = vpop.f32.mrb[0].mxu0
    %1623 = vdwg.mxu0
    %1624 = vmatprep.subr.bf16.mxu0 %v1250
    %1625 = vmatpush1.bf16.msra.mxu0 %v1249
    %1626 = vmatprep.subr.bf16.mxu0 %v1258
    %1627 = vmatpush1.bf16.msra.mxu0 %v1257
    %1628 = vmatprep.subr.bf16.mxu0 %v1266
    %1629 = vmatpush1.bf16.msra.mxu0 %v1265
    %1630 = vmatprep.subr.bf16.mxu0 %v1274
    %1631 = vmatpush1.bf16.msra.mxu0 %v1273
    %1632 = vmatprep.subr.bf16.mxu0 %v1282
    %1633 = vmatpush1.bf16.msra.mxu0 %v1281
    %1634 = vmatprep.subr.bf16.mxu0 %v1290
    %1635 = vmatpush1.bf16.msra.mxu0 %v1289
    %1636 = vmatprep.subr.bf16.mxu0 %v1298
    %1637 = vmatpush1.bf16.msra.mxu0 %v1297
    %1638 = vmatprep.subr.bf16.mxu0 %v1306
    %1639 = vmatpush1.bf16.msra.mxu0 %v1305
    %1640 = vmatprep.subr.bf16.mxu0 %v1314
    %1641 = vmatpush1.bf16.msra.mxu0 %v1313
    %1642 = vmatprep.subr.bf16.mxu0 %v1322
    %1643 = vmatpush1.bf16.msra.mxu0 %v1321
    %1644 = vmatprep.subr.bf16.mxu0 %v1330
    %1645 = vmatpush1.bf16.msra.mxu0 %v1329
    %1646 = vmatprep.subr.bf16.mxu0 %v1338
    %1647 = vmatpush1.bf16.msra.mxu0 %v1337
    %1648 = vmatprep.subr.bf16.mxu0 %v1346
    %1649 = vmatpush1.bf16.msra.mxu0 %v1345
    %1650 = vmatprep.subr.bf16.mxu0 %v1354
    %1651 = vmatpush1.bf16.msra.mxu0 %v1353
    %1652 = vmatprep.subr.bf16.mxu0 %v1362
    %1653 = vmatpush1.bf16.msra.mxu0 %v1361
    %1654 = vmatprep.subr.bf16.mxu0 %v1370
    %1655 = vmatpush1.bf16.msra.mxu0 %v1369
    %1656 = vmatprep.mubr.bf16.mxu0 %v858
    %1657 = vmatmul.mubr.bf16.gmra.mrb[0].mxu0 %v857
    %v1658 = vpop.f32.mrb[0].mxu0
    %v1659 = vadd.f32 %v1521, %v1658
    %v1660 = vpop.f32.mrb[0].mxu0
    %v1661 = vadd.f32 %v1525, %v1660
    %v1662 = vpop.f32.mrb[0].mxu0
    %v1663 = vpop.f32.mrb[0].mxu0
    %1664 = vdwg.mxu0
    %1665 = vmatprep.subr.bf16.mxu0 %v1252
    %1666 = vmatpush1.bf16.msra.mxu0 %v1251
    %1667 = vmatprep.subr.bf16.mxu0 %v1260
    %1668 = vmatpush1.bf16.msra.mxu0 %v1259
    %1669 = vmatprep.subr.bf16.mxu0 %v1268
    %1670 = vmatpush1.bf16.msra.mxu0 %v1267
    %1671 = vmatprep.subr.bf16.mxu0 %v1276
    %1672 = vmatpush1.bf16.msra.mxu0 %v1275
    %1673 = vmatprep.subr.bf16.mxu0 %v1284
    %1674 = vmatpush1.bf16.msra.mxu0 %v1283
    %1675 = vmatprep.subr.bf16.mxu0 %v1292
    %1676 = vmatpush1.bf16.msra.mxu0 %v1291
    %1677 = vmatprep.subr.bf16.mxu0 %v1300
    %1678 = vmatpush1.bf16.msra.mxu0 %v1299
    %1679 = vmatprep.subr.bf16.mxu0 %v1308
    %1680 = vmatpush1.bf16.msra.mxu0 %v1307
    %1681 = vmatprep.subr.bf16.mxu0 %v1316
    %1682 = vmatpush1.bf16.msra.mxu0 %v1315
    %1683 = vmatprep.subr.bf16.mxu0 %v1324
    %1684 = vmatpush1.bf16.msra.mxu0 %v1323
    %1685 = vmatprep.subr.bf16.mxu0 %v1332
    %1686 = vmatpush1.bf16.msra.mxu0 %v1331
    %1687 = vmatprep.subr.bf16.mxu0 %v1340
    %1688 = vmatpush1.bf16.msra.mxu0 %v1339
    %1689 = vmatprep.subr.bf16.mxu0 %v1348
    %1690 = vmatpush1.bf16.msra.mxu0 %v1347
    %1691 = vmatprep.subr.bf16.mxu0 %v1356
    %1692 = vmatpush1.bf16.msra.mxu0 %v1355
    %1693 = vmatprep.subr.bf16.mxu0 %v1364
    %1694 = vmatpush1.bf16.msra.mxu0 %v1363
    %1695 = vmatprep.subr.bf16.mxu0 %v1372
    %1696 = vmatpush1.bf16.msra.mxu0 %v1371
    %1697 = vmatprep.mubr.bf16.mxu0 %v858
    %1698 = vmatmul.mubr.bf16.gmra.mrb[0].mxu0 %v857
    %v1699 = vpop.f32.mrb[0].mxu0
    %v1700 = vadd.f32 %v1529, %v1699
    %v1701 = vpop.f32.mrb[0].mxu0
    %v1702 = vadd.f32 %v1533, %v1701
    %v1703 = vpop.f32.mrb[0].mxu0
    %v1704 = vpop.f32.mrb[0].mxu0
    %1705 = vdwg.mxu0
    %v1706 = vxor.u32 %v1577, 2147483648
    %v1707 = vxor.u32 %v1579, 2147483648
    %v1708 = vmul.f32 %v1706, 1.442695
    %v1709 = vpow.pop %v1708
    %v1710 = vmul.f32 %v1707, 1.442695
    %v1711 = vpow.pop %v1710
    %v1712 = vadd.f32 %v1709, 1.0
    %v1713 = vadd.f32 %v1711, 1.0
    %v1714 = vrcp.pop %v1712
    %v1715 = vmul.f32 1.0, %v1714
    %v1716 = vrcp.pop %v1713
    %v1717 = vmul.f32 1.0, %v1716
    %v1718 = vxor.u32 %v1618, 2147483648
    %v1719 = vxor.u32 %v1620, 2147483648
    %v1720 = vmul.f32 %v1718, 1.442695
    %v1721 = vpow.pop %v1720
    %v1722 = vmul.f32 %v1719, 1.442695
    %v1723 = vpow.pop %v1722
    %v1724 = vadd.f32 %v1721, 1.0
    %v1725 = vadd.f32 %v1723, 1.0
    %v1726 = vrcp.pop %v1724
    %v1727 = vmul.f32 1.0, %v1726
    %v1728 = vrcp.pop %v1725
    %v1729 = vmul.f32 1.0, %v1728
    %v1730 = vtanh.pop %v1659
    %v1731 = vtanh.pop %v1661
    %v1732 = vxor.u32 %v1700, 2147483648
    %v1733 = vxor.u32 %v1702, 2147483648
    %v1734 = vmul.f32 %v1732, 1.442695
    %v1735 = vpow.pop %v1734
    %v1736 = vmul.f32 %v1733, 1.442695
    %v1737 = vpow.pop %v1736
    %v1738 = vadd.f32 %v1735, 1.0
    %v1739 = vadd.f32 %v1737, 1.0
    %v1740 = vrcp.pop %v1738
    %v1741 = vmul.f32 1.0, %v1740
    %v1742 = vrcp.pop %v1739
    %v1743 = vmul.f32 1.0, %v1742
    %v1744 = vmul.f32 %v1727, %v854
    %v1745 = vmul.f32 %v1729, 0.0
    %v1746 = vmul.f32 %v1715, %v1730
    %v1747 = vmul.f32 %v1717, %v1731
    %v1748 = vadd.f32 %v1744, %v1746
    %v1749 = vadd.f32 %v1745, %v1747
    %v1750 = vtanh.pop %v1748
    %v1751 = vtanh.pop %v1749
    %v1752 = vmul.f32 %v1741, %v1750
    %v1753 = vmul.f32 %v1743, %v1751
    %v1754 = vpack.c.bf16 %v1753, %v1753
    %vm1755 = vcmask 1040384
    %vm1756 = vsmask.f32 256
    %vm1757 = vmand %vm1755, %vm1756
    %v1758 = vld [vmem:[#allocation3] sm:$0x1]
    %v1759 = vsel %vm1757, %v1754, %v1758
    %1760 = vst [vmem:[#allocation3] sm:$0x1] %v1759
    %v1761 = vpack.c.bf16 %v1752, %v1752
    %s1762 = scalar_lea.vmem [#allocation2], 2
    %v1763 = vld [vmem:[%s1762] ss:$4 sm:$0xff]
    %v1765 = vlaneseq
    %v1766 = vshrl.u32 %v1765, 7
    %v1767 = vsub.s32 0, %v1766
    %v1768 = vrot.slane %v1763, %v1767
    %v1769 = vlaneseq
    %v1770 = vshrl.u32 %v1769, 7
    %v1771 = vsub.s32 1, %v1770
    %v1772 = vrot.slane %v1763, %v1771
    %v1773 = vlaneseq
    %v1774 = vshrl.u32 %v1773, 7
    %v1775 = vsub.s32 2, %v1774
    %v1776 = vrot.slane %v1763, %v1775
    %v1777 = vlaneseq
    %v1778 = vshrl.u32 %v1777, 7
    %v1779 = vsub.s32 3, %v1778
    %v1780 = vrot.slane %v1763, %v1779
    %v1781 = vlaneseq
    %v1782 = vshrl.u32 %v1781, 7
    %v1783 = vsub.s32 4, %v1782
    %v1784 = vrot.slane %v1763, %v1783
    %v1785 = vlaneseq
    %v1786 = vshrl.u32 %v1785, 7
    %v1787 = vsub.s32 5, %v1786
    %v1788 = vrot.slane %v1763, %v1787
    %v1789 = vlaneseq
    %v1790 = vshrl.u32 %v1789, 7
    %v1791 = vsub.s32 6, %v1790
    %v1792 = vrot.slane %v1763, %v1791
    %v1793 = vlaneseq
    %v1794 = vshrl.u32 %v1793, 7
    %v1795 = vsub.s32 7, %v1794
    %v1796 = vrot.slane %v1763, %v1795
    %1805 = vmatprep.subr.bf16.mxu0 %v1246
    %1806 = vmatpush1.bf16.msra.mxu0 %v1245
    %1807 = vmatprep.subr.bf16.mxu0 %v1254
    %1808 = vmatpush1.bf16.msra.mxu0 %v1253
    %1809 = vmatprep.subr.bf16.mxu0 %v1262
    %1810 = vmatpush1.bf16.msra.mxu0 %v1261
    %1811 = vmatprep.subr.bf16.mxu0 %v1270
    %1812 = vmatpush1.bf16.msra.mxu0 %v1269
    %1813 = vmatprep.subr.bf16.mxu0 %v1278
    %1814 = vmatpush1.bf16.msra.mxu0 %v1277
    %1815 = vmatprep.subr.bf16.mxu0 %v1286
    %1816 = vmatpush1.bf16.msra.mxu0 %v1285
    %1817 = vmatprep.subr.bf16.mxu0 %v1294
    %1818 = vmatpush1.bf16.msra.mxu0 %v1293
    %1819 = vmatprep.subr.bf16.mxu0 %v1302
    %1820 = vmatpush1.bf16.msra.mxu0 %v1301
    %1821 = vmatprep.subr.bf16.mxu0 %v1310
    %1822 = vmatpush1.bf16.msra.mxu0 %v1309
    %1823 = vmatprep.subr.bf16.mxu0 %v1318
    %1824 = vmatpush1.bf16.msra.mxu0 %v1317
    %1825 = vmatprep.subr.bf16.mxu0 %v1326
    %1826 = vmatpush1.bf16.msra.mxu0 %v1325
    %1827 = vmatprep.subr.bf16.mxu0 %v1334
    %1828 = vmatpush1.bf16.msra.mxu0 %v1333
    %1829 = vmatprep.subr.bf16.mxu0 %v1342
    %1830 = vmatpush1.bf16.msra.mxu0 %v1341
    %1831 = vmatprep.subr.bf16.mxu0 %v1350
    %1832 = vmatpush1.bf16.msra.mxu0 %v1349
    %1833 = vmatprep.subr.bf16.mxu0 %v1358
    %1834 = vmatpush1.bf16.msra.mxu0 %v1357
    %1835 = vmatprep.subr.bf16.mxu0 %v1366
    %1836 = vmatpush1.bf16.msra.mxu0 %v1365
    %1837 = vmatprep.mubr.bf16.mxu0 %v1754
    %1838 = vmatmul.mubr.bf16.gmra.mrb[0].mxu0 %v1761
    %v1839 = vpop.f32.mrb[0].mxu0
    %v1840 = vadd.f32 %v1768, %v1839
    %v1841 = vpop.f32.mrb[0].mxu0
    %v1842 = vadd.f32 %v1772, %v1841
    %v1843 = vpop.f32.mrb[0].mxu0
    %v1844 = vpop.f32.mrb[0].mxu0
    %1845 = vdwg.mxu0
    %1846 = vmatprep.subr.bf16.mxu0 %v1248
    %1847 = vmatpush1.bf16.msra.mxu0 %v1247
    %1848 = vmatprep.subr.bf16.mxu0 %v1256
    %1849 = vmatpush1.bf16.msra.mxu0 %v1255
    %1850 = vmatprep.subr.bf16.mxu0 %v1264
    %1851 = vmatpush1.bf16.msra.mxu0 %v1263
    %1852 = vmatprep.subr.bf16.mxu0 %v1272
    %1853 = vmatpush1.bf16.msra.mxu0 %v1271
    %1854 = vmatprep.subr.bf16.mxu0 %v1280
    %1855 = vmatpush1.bf16.msra.mxu0 %v1279
    %1856 = vmatprep.subr.bf16.mxu0 %v1288
    %1857 = vmatpush1.bf16.msra.mxu0 %v1287
    %1858 = vmatprep.subr.bf16.mxu0 %v1296
    %1859 = vmatpush1.bf16.msra.mxu0 %v1295
    %1860 = vmatprep.subr.bf16.mxu0 %v1304
    %1861 = vmatpush1.bf16.msra.mxu0 %v1303
    %1862 = vmatprep.subr.bf16.mxu0 %v1312
    %1863 = vmatpush1.bf16.msra.mxu0 %v1311
    %1864 = vmatprep.subr.bf16.mxu0 %v1320
    %1865 = vmatpush1.bf16.msra.mxu0 %v1319
    %1866 = vmatprep.subr.bf16.mxu0 %v1328
    %1867 = vmatpush1.bf16.msra.mxu0 %v1327
    %1868 = vmatprep.subr.bf16.mxu0 %v1336
    %1869 = vmatpush1.bf16.msra.mxu0 %v1335
    %1870 = vmatprep.subr.bf16.mxu0 %v1344
    %1871 = vmatpush1.bf16.msra.mxu0 %v1343
    %1872 = vmatprep.subr.bf16.mxu0 %v1352
    %1873 = vmatpush1.bf16.msra.mxu0 %v1351
    %1874 = vmatprep.subr.bf16.mxu0 %v1360
    %1875 = vmatpush1.bf16.msra.mxu0 %v1359
    %1876 = vmatprep.subr.bf16.mxu0 %v1368
    %1877 = vmatpush1.bf16.msra.mxu0 %v1367
    %1878 = vmatprep.mubr.bf16.mxu0 %v1754
    %1879 = vmatmul.mubr.bf16.gmra.mrb[0].mxu0 %v1761
    %v1880 = vpop.f32.mrb[0].mxu0
    %v1881 = vadd.f32 %v1776, %v1880
    %v1882 = vpop.f32.mrb[0].mxu0
    %v1883 = vadd.f32 %v1780, %v1882
    %v1884 = vpop.f32.mrb[0].mxu0
    %v1885 = vpop.f32.mrb[0].mxu0
    %1886 = vdwg.mxu0
    %1887 = vmatprep.subr.bf16.mxu0 %v1250
    %1888 = vmatpush1.bf16.msra.mxu0 %v1249
    %1889 = vmatprep.subr.bf16.mxu0 %v1258
    %1890 = vmatpush1.bf16.msra.mxu0 %v1257
    %1891 = vmatprep.subr.bf16.mxu0 %v1266
    %1892 = vmatpush1.bf16.msra.mxu0 %v1265
    %1893 = vmatprep.subr.bf16.mxu0 %v1274
    %1894 = vmatpush1.bf16.msra.mxu0 %v1273
    %1895 = vmatprep.subr.bf16.mxu0 %v1282
    %1896 = vmatpush1.bf16.msra.mxu0 %v1281
    %1897 = vmatprep.subr.bf16.mxu0 %v1290
    %1898 = vmatpush1.bf16.msra.mxu0 %v1289
    %1899 = vmatprep.subr.bf16.mxu0 %v1298
    %1900 = vmatpush1.bf16.msra.mxu0 %v1297
    %1901 = vmatprep.subr.bf16.mxu0 %v1306
    %1902 = vmatpush1.bf16.msra.mxu0 %v1305
    %1903 = vmatprep.subr.bf16.mxu0 %v1314
    %1904 = vmatpush1.bf16.msra.mxu0 %v1313
    %1905 = vmatprep.subr.bf16.mxu0 %v1322
    %1906 = vmatpush1.bf16.msra.mxu0 %v1321
    %1907 = vmatprep.subr.bf16.mxu0 %v1330
    %1908 = vmatpush1.bf16.msra.mxu0 %v1329
    %1909 = vmatprep.subr.bf16.mxu0 %v1338
    %1910 = vmatpush1.bf16.msra.mxu0 %v1337
    %1911 = vmatprep.subr.bf16.mxu0 %v1346
    %1912 = vmatpush1.bf16.msra.mxu0 %v1345
    %1913 = vmatprep.subr.bf16.mxu0 %v1354
    %1914 = vmatpush1.bf16.msra.mxu0 %v1353
    %1915 = vmatprep.subr.bf16.mxu0 %v1362
    %1916 = vmatpush1.bf16.msra.mxu0 %v1361
    %1917 = vmatprep.subr.bf16.mxu0 %v1370
    %1918 = vmatpush1.bf16.msra.mxu0 %v1369
    %1919 = vmatprep.mubr.bf16.mxu0 %v1754
    %1920 = vmatmul.mubr.bf16.gmra.mrb[0].mxu0 %v1761
    %v1921 = vpop.f32.mrb[0].mxu0
    %v1922 = vadd.f32 %v1784, %v1921
    %v1923 = vpop.f32.mrb[0].mxu0
    %v1924 = vadd.f32 %v1788, %v1923
    %v1925 = vpop.f32.mrb[0].mxu0
    %v1926 = vpop.f32.mrb[0].mxu0
    %1927 = vdwg.mxu0
    %1928 = vmatprep.subr.bf16.mxu0 %v1252
    %1929 = vmatpush1.bf16.msra.mxu0 %v1251
    %1930 = vmatprep.subr.bf16.mxu0 %v1260
    %1931 = vmatpush1.bf16.msra.mxu0 %v1259
    %1932 = vmatprep.subr.bf16.mxu0 %v1268
    %1933 = vmatpush1.bf16.msra.mxu0 %v1267
    %1934 = vmatprep.subr.bf16.mxu0 %v1276
    %1935 = vmatpush1.bf16.msra.mxu0 %v1275
    %1936 = vmatprep.subr.bf16.mxu0 %v1284
    %1937 = vmatpush1.bf16.msra.mxu0 %v1283
    %1938 = vmatprep.subr.bf16.mxu0 %v1292
    %1939 = vmatpush1.bf16.msra.mxu0 %v1291
    %1940 = vmatprep.subr.bf16.mxu0 %v1300
    %1941 = vmatpush1.bf16.msra.mxu0 %v1299
    %1942 = vmatprep.subr.bf16.mxu0 %v1308
    %1943 = vmatpush1.bf16.msra.mxu0 %v1307
    %1944 = vmatprep.subr.bf16.mxu0 %v1316
    %1945 = vmatpush1.bf16.msra.mxu0 %v1315
    %1946 = vmatprep.subr.bf16.mxu0 %v1324
    %1947 = vmatpush1.bf16.msra.mxu0 %v1323
    %1948 = vmatprep.subr.bf16.mxu0 %v1332
    %1949 = vmatpush1.bf16.msra.mxu0 %v1331
    %1950 = vmatprep.subr.bf16.mxu0 %v1340
    %1951 = vmatpush1.bf16.msra.mxu0 %v1339
    %1952 = vmatprep.subr.bf16.mxu0 %v1348
    %1953 = vmatpush1.bf16.msra.mxu0 %v1347
    %1954 = vmatprep.subr.bf16.mxu0 %v1356
    %1955 = vmatpush1.bf16.msra.mxu0 %v1355
    %1956 = vmatprep.subr.bf16.mxu0 %v1364
    %1957 = vmatpush1.bf16.msra.mxu0 %v1363
    %1958 = vmatprep.subr.bf16.mxu0 %v1372
    %1959 = vmatpush1.bf16.msra.mxu0 %v1371
    %1960 = vmatprep.mubr.bf16.mxu0 %v1754
    %1961 = vmatmul.mubr.bf16.gmra.mrb[0].mxu0 %v1761
    %v1962 = vpop.f32.mrb[0].mxu0
    %v1963 = vadd.f32 %v1792, %v1962
    %v1964 = vpop.f32.mrb[0].mxu0
    %v1965 = vadd.f32 %v1796, %v1964
    %v1966 = vpop.f32.mrb[0].mxu0
    %v1967 = vpop.f32.mrb[0].mxu0
    %1968 = vdwg.mxu0
    %v1969 = vxor.u32 %v1840, 2147483648
    %v1970 = vxor.u32 %v1842, 2147483648
    %v1971 = vmul.f32 %v1969, 1.442695
    %v1972 = vpow.pop %v1971
    %v1973 = vmul.f32 %v1970, 1.442695
    %v1974 = vpow.pop %v1973
    %v1975 = vadd.f32 %v1972, 1.0
    %v1976 = vadd.f32 %v1974, 1.0
    %v1977 = vrcp.pop %v1975
    %v1978 = vmul.f32 1.0, %v1977
    %v1979 = vrcp.pop %v1976
    %v1980 = vmul.f32 1.0, %v1979
    %v1981 = vxor.u32 %v1881, 2147483648
    %v1982 = vxor.u32 %v1883, 2147483648
    %v1983 = vmul.f32 %v1981, 1.442695
    %v1984 = vpow.pop %v1983
    %v1985 = vmul.f32 %v1982, 1.442695
    %v1986 = vpow.pop %v1985
    %v1987 = vadd.f32 %v1984, 1.0
    %v1988 = vadd.f32 %v1986, 1.0
    %v1989 = vrcp.pop %v1987
    %v1990 = vmul.f32 1.0, %v1989
    %v1991 = vrcp.pop %v1988
    %v1992 = vmul.f32 1.0, %v1991
    %v1993 = vtanh.pop %v1922
    %v1994 = vtanh.pop %v1924
    %v1995 = vxor.u32 %v1963, 2147483648
    %v1996 = vxor.u32 %v1965, 2147483648
    %v1997 = vmul.f32 %v1995, 1.442695
    %v1998 = vpow.pop %v1997
    %v1999 = vmul.f32 %v1996, 1.442695
    %v2000 = vpow.pop %v1999
    %v2001 = vadd.f32 %v1998, 1.0
    %v2002 = vadd.f32 %v2000, 1.0
    %v2003 = vrcp.pop %v2001
    %v2004 = vmul.f32 1.0, %v2003
    %v2005 = vrcp.pop %v2002
    %v2006 = vmul.f32 1.0, %v2005
    %v2007 = vmul.f32 %v1990, %v1748
    %v2008 = vmul.f32 %v1992, %v1749
    %v2009 = vmul.f32 %v1978, %v1993
    %v2010 = vmul.f32 %v1980, %v1994
    %v2011 = vadd.f32 %v2007, %v2009
    %v2012 = vadd.f32 %v2008, %v2010
    %v2013 = vtanh.pop %v2011
    %v2014 = vtanh.pop %v2012
    %v2015 = vmul.f32 %v2004, %v2013
    %v2016 = vmul.f32 %v2006, %v2014
    %v2017 = vpack.c.bf16 %v2016, %v2016
    %v2020 = vunpack.c.l.s4 1983009808
    %v2021 = vunpack.c.0.s8 %v2020
    %v2022 = vlaneseq
    %v2023 = vshrl.u32 %v2022, 7
    %v2024 = vsub.s32 %v2021, %v2023
    %v2025 = vrot.slane %v2017, %v2024
    %v2027 = vshll.u32 %v2025, 16
    %vm2030 = vsmask.f32 7938
    %vm2031 = vmand %vm1755, %vm2030
    %v2032 = vld [vmem:[#allocation3] sm:$0x1]
    %v2033 = vsel %vm2031, %v2027, %v2032
    %2034 = vst [vmem:[#allocation3] sm:$0x1] %v2033
    %v2035 = vpack.c.bf16 %v2015, %v2015
    %s2036 = scalar_lea.vmem [#allocation2], 3
    %v2037 = vld [vmem:[%s2036] ss:$4 sm:$0xff]
    %v2039 = vlaneseq
    %v2040 = vshrl.u32 %v2039, 7
    %v2041 = vsub.s32 0, %v2040
    %v2042 = vrot.slane %v2037, %v2041
    %v2043 = vlaneseq
    %v2044 = vshrl.u32 %v2043, 7
    %v2045 = vsub.s32 1, %v2044
    %v2046 = vrot.slane %v2037, %v2045
    %v2047 = vlaneseq
    %v2048 = vshrl.u32 %v2047, 7
    %v2049 = vsub.s32 2, %v2048
    %v2050 = vrot.slane %v2037, %v2049
    %v2051 = vlaneseq
    %v2052 = vshrl.u32 %v2051, 7
    %v2053 = vsub.s32 3, %v2052
    %v2054 = vrot.slane %v2037, %v2053
    %v2055 = vlaneseq
    %v2056 = vshrl.u32 %v2055, 7
    %v2057 = vsub.s32 4, %v2056
    %v2058 = vrot.slane %v2037, %v2057
    %v2059 = vlaneseq
    %v2060 = vshrl.u32 %v2059, 7
    %v2061 = vsub.s32 5, %v2060
    %v2062 = vrot.slane %v2037, %v2061
    %v2063 = vlaneseq
    %v2064 = vshrl.u32 %v2063, 7
    %v2065 = vsub.s32 6, %v2064
    %v2066 = vrot.slane %v2037, %v2065
    %v2067 = vlaneseq
    %v2068 = vshrl.u32 %v2067, 7
    %v2069 = vsub.s32 7, %v2068
    %v2070 = vrot.slane %v2037, %v2069
    %2079 = vmatprep.subr.bf16.mxu0 %v1246
    %2080 = vmatpush1.bf16.msra.mxu0 %v1245
    %2081 = vmatprep.subr.bf16.mxu0 %v1254
    %2082 = vmatpush1.bf16.msra.mxu0 %v1253
    %2083 = vmatprep.subr.bf16.mxu0 %v1262
    %2084 = vmatpush1.bf16.msra.mxu0 %v1261
    %2085 = vmatprep.subr.bf16.mxu0 %v1270
    %2086 = vmatpush1.bf16.msra.mxu0 %v1269
    %2087 = vmatprep.subr.bf16.mxu0 %v1278
    %2088 = vmatpush1.bf16.msra.mxu0 %v1277
    %2089 = vmatprep.subr.bf16.mxu0 %v1286
    %2090 = vmatpush1.bf16.msra.mxu0 %v1285
    %2091 = vmatprep.subr.bf16.mxu0 %v1294
    %2092 = vmatpush1.bf16.msra.mxu0 %v1293
    %2093 = vmatprep.subr.bf16.mxu0 %v1302
    %2094 = vmatpush1.bf16.msra.mxu0 %v1301
    %2095 = vmatprep.subr.bf16.mxu0 %v1310
    %2096 = vmatpush1.bf16.msra.mxu0 %v1309
    %2097 = vmatprep.subr.bf16.mxu0 %v1318
    %2098 = vmatpush1.bf16.msra.mxu0 %v1317
    %2099 = vmatprep.subr.bf16.mxu0 %v1326
    %2100 = vmatpush1.bf16.msra.mxu0 %v1325
    %2101 = vmatprep.subr.bf16.mxu0 %v1334
    %2102 = vmatpush1.bf16.msra.mxu0 %v1333
    %2103 = vmatprep.subr.bf16.mxu0 %v1342
    %2104 = vmatpush1.bf16.msra.mxu0 %v1341
    %2105 = vmatprep.subr.bf16.mxu0 %v1350
    %2106 = vmatpush1.bf16.msra.mxu0 %v1349
    %2107 = vmatprep.subr.bf16.mxu0 %v1358
    %2108 = vmatpush1.bf16.msra.mxu0 %v1357
    %2109 = vmatprep.subr.bf16.mxu0 %v1366
    %2110 = vmatpush1.bf16.msra.mxu0 %v1365
    %2111 = vmatprep.mubr.bf16.mxu0 %v2017
    %2112 = vmatmul.mubr.bf16.gmra.mrb[0].mxu0 %v2035
    %v2113 = vpop.f32.mrb[0].mxu0
    %v2114 = vadd.f32 %v2042, %v2113
    %v2115 = vpop.f32.mrb[0].mxu0
    %v2116 = vadd.f32 %v2046, %v2115
    %v2117 = vpop.f32.mrb[0].mxu0
    %v2118 = vpop.f32.mrb[0].mxu0
    %2119 = vdwg.mxu0
    %2120 = vmatprep.subr.bf16.mxu0 %v1248
    %2121 = vmatpush1.bf16.msra.mxu0 %v1247
    %2122 = vmatprep.subr.bf16.mxu0 %v1256
    %2123 = vmatpush1.bf16.msra.mxu0 %v1255
    %2124 = vmatprep.subr.bf16.mxu0 %v1264
    %2125 = vmatpush1.bf16.msra.mxu0 %v1263
    %2126 = vmatprep.subr.bf16.mxu0 %v1272
    %2127 = vmatpush1.bf16.msra.mxu0 %v1271
    %2128 = vmatprep.subr.bf16.mxu0 %v1280
    %2129 = vmatpush1.bf16.msra.mxu0 %v1279
    %2130 = vmatprep.subr.bf16.mxu0 %v1288
    %2131 = vmatpush1.bf16.msra.mxu0 %v1287
    %2132 = vmatprep.subr.bf16.mxu0 %v1296
    %2133 = vmatpush1.bf16.msra.mxu0 %v1295
    %2134 = vmatprep.subr.bf16.mxu0 %v1304
    %2135 = vmatpush1.bf16.msra.mxu0 %v1303
    %2136 = vmatprep.subr.bf16.mxu0 %v1312
    %2137 = vmatpush1.bf16.msra.mxu0 %v1311
    %2138 = vmatprep.subr.bf16.mxu0 %v1320
    %2139 = vmatpush1.bf16.msra.mxu0 %v1319
    %2140 = vmatprep.subr.bf16.mxu0 %v1328
    %2141 = vmatpush1.bf16.msra.mxu0 %v1327
    %2142 = vmatprep.subr.bf16.mxu0 %v1336
    %2143 = vmatpush1.bf16.msra.mxu0 %v1335
    %2144 = vmatprep.subr.bf16.mxu0 %v1344
    %2145 = vmatpush1.bf16.msra.mxu0 %v1343
    %2146 = vmatprep.subr.bf16.mxu0 %v1352
    %2147 = vmatpush1.bf16.msra.mxu0 %v1351
    %2148 = vmatprep.subr.bf16.mxu0 %v1360
    %2149 = vmatpush1.bf16.msra.mxu0 %v1359
    %2150 = vmatprep.subr.bf16.mxu0 %v1368
    %2151 = vmatpush1.bf16.msra.mxu0 %v1367
    %2152 = vmatprep.mubr.bf16.mxu0 %v2017
    %2153 = vmatmul.mubr.bf16.gmra.mrb[0].mxu0 %v2035
    %v2154 = vpop.f32.mrb[0].mxu0
    %v2155 = vadd.f32 %v2050, %v2154
    %v2156 = vpop.f32.mrb[0].mxu0
    %v2157 = vadd.f32 %v2054, %v2156
    %v2158 = vpop.f32.mrb[0].mxu0
    %v2159 = vpop.f32.mrb[0].mxu0
    %2160 = vdwg.mxu0
    %2161 = vmatprep.subr.bf16.mxu0 %v1250
    %2162 = vmatpush1.bf16.msra.mxu0 %v1249
    %2163 = vmatprep.subr.bf16.mxu0 %v1258
    %2164 = vmatpush1.bf16.msra.mxu0 %v1257
    %2165 = vmatprep.subr.bf16.mxu0 %v1266
    %2166 = vmatpush1.bf16.msra.mxu0 %v1265
    %2167 = vmatprep.subr.bf16.mxu0 %v1274
    %2168 = vmatpush1.bf16.msra.mxu0 %v1273
    %2169 = vmatprep.subr.bf16.mxu0 %v1282
    %2170 = vmatpush1.bf16.msra.mxu0 %v1281
    %2171 = vmatprep.subr.bf16.mxu0 %v1290
    %2172 = vmatpush1.bf16.msra.mxu0 %v1289
    %2173 = vmatprep.subr.bf16.mxu0 %v1298
    %2174 = vmatpush1.bf16.msra.mxu0 %v1297
    %2175 = vmatprep.subr.bf16.mxu0 %v1306
    %2176 = vmatpush1.bf16.msra.mxu0 %v1305
    %2177 = vmatprep.subr.bf16.mxu0 %v1314
    %2178 = vmatpush1.bf16.msra.mxu0 %v1313
    %2179 = vmatprep.subr.bf16.mxu0 %v1322
    %2180 = vmatpush1.bf16.msra.mxu0 %v1321
    %2181 = vmatprep.subr.bf16.mxu0 %v1330
    %2182 = vmatpush1.bf16.msra.mxu0 %v1329
    %2183 = vmatprep.subr.bf16.mxu0 %v1338
    %2184 = vmatpush1.bf16.msra.mxu0 %v1337
    %2185 = vmatprep.subr.bf16.mxu0 %v1346
    %2186 = vmatpush1.bf16.msra.mxu0 %v1345
    %2187 = vmatprep.subr.bf16.mxu0 %v1354
    %2188 = vmatpush1.bf16.msra.mxu0 %v1353
    %2189 = vmatprep.subr.bf16.mxu0 %v1362
    %2190 = vmatpush1.bf16.msra.mxu0 %v1361
    %2191 = vmatprep.subr.bf16.mxu0 %v1370
    %2192 = vmatpush1.bf16.msra.mxu0 %v1369
    %2193 = vmatprep.mubr.bf16.mxu0 %v2017
    %2194 = vmatmul.mubr.bf16.gmra.mrb[0].mxu0 %v2035
    %v2195 = vpop.f32.mrb[0].mxu0
    %v2196 = vadd.f32 %v2058, %v2195
    %v2197 = vpop.f32.mrb[0].mxu0
    %v2198 = vadd.f32 %v2062, %v2197
    %v2199 = vpop.f32.mrb[0].mxu0
    %v2200 = vpop.f32.mrb[0].mxu0
    %2201 = vdwg.mxu0
    %2202 = vmatprep.subr.bf16.mxu0 %v1252
    %2203 = vmatpush1.bf16.msra.mxu0 %v1251
    %2204 = vmatprep.subr.bf16.mxu0 %v1260
    %2205 = vmatpush1.bf16.msra.mxu0 %v1259
    %2206 = vmatprep.subr.bf16.mxu0 %v1268
    %2207 = vmatpush1.bf16.msra.mxu0 %v1267
    %2208 = vmatprep.subr.bf16.mxu0 %v1276
    %2209 = vmatpush1.bf16.msra.mxu0 %v1275
    %2210 = vmatprep.subr.bf16.mxu0 %v1284
    %2211 = vmatpush1.bf16.msra.mxu0 %v1283
    %2212 = vmatprep.subr.bf16.mxu0 %v1292
    %2213 = vmatpush1.bf16.msra.mxu0 %v1291
    %2214 = vmatprep.subr.bf16.mxu0 %v1300
    %2215 = vmatpush1.bf16.msra.mxu0 %v1299
    %2216 = vmatprep.subr.bf16.mxu0 %v1308
    %2217 = vmatpush1.bf16.msra.mxu0 %v1307
    %2218 = vmatprep.subr.bf16.mxu0 %v1316
    %2219 = vmatpush1.bf16.msra.mxu0 %v1315
    %2220 = vmatprep.subr.bf16.mxu0 %v1324
    %2221 = vmatpush1.bf16.msra.mxu0 %v1323
    %2222 = vmatprep.subr.bf16.mxu0 %v1332
    %2223 = vmatpush1.bf16.msra.mxu0 %v1331
    %2224 = vmatprep.subr.bf16.mxu0 %v1340
    %2225 = vmatpush1.bf16.msra.mxu0 %v1339
    %2226 = vmatprep.subr.bf16.mxu0 %v1348
    %2227 = vmatpush1.bf16.msra.mxu0 %v1347
    %2228 = vmatprep.subr.bf16.mxu0 %v1356
    %2229 = vmatpush1.bf16.msra.mxu0 %v1355
    %2230 = vmatprep.subr.bf16.mxu0 %v1364
    %2231 = vmatpush1.bf16.msra.mxu0 %v1363
    %2232 = vmatprep.subr.bf16.mxu0 %v1372
    %2233 = vmatpush1.bf16.msra.mxu0 %v1371
    %2234 = vmatprep.mubr.bf16.mxu0 %v2017
    %2235 = vmatmul.mubr.bf16.gmra.mrb[0].mxu0 %v2035
    %v2236 = vpop.f32.mrb[0].mxu0
    %v2237 = vadd.f32 %v2066, %v2236
    %v2238 = vpop.f32.mrb[0].mxu0
    %v2239 = vadd.f32 %v2070, %v2238
    %v2240 = vpop.f32.mrb[0].mxu0
    %v2241 = vpop.f32.mrb[0].mxu0
    %2242 = vdwg.mxu0
    %v2243 = vxor.u32 %v2114, 2147483648
    %v2244 = vxor.u32 %v2116, 2147483648
    %v2245 = vmul.f32 %v2243, 1.442695
    %v2246 = vpow.pop %v2245
    %v2247 = vmul.f32 %v2244, 1.442695
    %v2248 = vpow.pop %v2247
    %v2249 = vadd.f32 %v2246, 1.0
    %v2250 = vadd.f32 %v2248, 1.0
    %v2251 = vrcp.pop %v2249
    %v2252 = vmul.f32 1.0, %v2251
    %v2253 = vrcp.pop %v2250
    %v2254 = vmul.f32 1.0, %v2253
    %v2255 = vxor.u32 %v2155, 2147483648
    %v2256 = vxor.u32 %v2157, 2147483648
    %v2257 = vmul.f32 %v2255, 1.442695
    %v2258 = vpow.pop %v2257
    %v2259 = vmul.f32 %v2256, 1.442695
    %v2260 = vpow.pop %v2259
    %v2261 = vadd.f32 %v2258, 1.0
    %v2262 = vadd.f32 %v2260, 1.0
    %v2263 = vrcp.pop %v2261
    %v2264 = vmul.f32 1.0, %v2263
    %v2265 = vrcp.pop %v2262
    %v2266 = vmul.f32 1.0, %v2265
    %v2267 = vtanh.pop %v2196
    %v2268 = vtanh.pop %v2198
    %v2269 = vxor.u32 %v2237, 2147483648
    %v2270 = vxor.u32 %v2239, 2147483648
    %v2271 = vmul.f32 %v2269, 1.442695
    %v2272 = vpow.pop %v2271
    %v2273 = vmul.f32 %v2270, 1.442695
    %v2274 = vpow.pop %v2273
    %v2275 = vadd.f32 %v2272, 1.0
    %v2276 = vadd.f32 %v2274, 1.0
    %v2277 = vrcp.pop %v2275
    %v2278 = vmul.f32 1.0, %v2277
    %v2279 = vrcp.pop %v2276
    %v2280 = vmul.f32 1.0, %v2279
    %v2281 = vmul.f32 %v2264, %v2011
    %v2282 = vmul.f32 %v2266, %v2012
    %v2283 = vmul.f32 %v2252, %v2267
    %v2284 = vmul.f32 %v2254, %v2268
    %v2285 = vadd.f32 %v2281, %v2283
    %v2286 = vadd.f32 %v2282, %v2284
    %v2287 = vtanh.pop %v2285
    %v2288 = vtanh.pop %v2286
    %v2289 = vmul.f32 %v2278, %v2287
    %v2290 = vmul.f32 %v2280, %v2288
    %v2291 = vpack.c.bf16 %v2290, %v2290
    %v2294 = vunpack.c.l.s4 1983009808
    %v2295 = vunpack.c.0.s8 %v2294
    %v2296 = vlaneseq
    %v2297 = vshrl.u32 %v2296, 7
    %v2298 = vsub.s32 %v2295, %v2297
    %v2299 = vrot.slane %v2291, %v2298
    %v2300 = vrot.slane %v2299, 7
    %vm2302 = vcmask 1041409
    %vm2303 = vsmask.f32 1280
    %vm2304 = vmand %vm2302, %vm2303
    %v2305 = vld [vmem:[#allocation3] sm:$0x2]
    %v2306 = vsel %vm2304, %v2300, %v2305
    %2307 = vst [vmem:[#allocation3] sm:$0x2] %v2306
    %v2308 = vpack.c.bf16 %v2289, %v2289
    %v2309 = vld [vmem:[%s2036] ss:$4 sm:$0xff]
    %v2311 = vlaneseq
    %v2312 = vshrl.u32 %v2311, 7
    %v2313 = vsub.s32 1, %v2312
    %v2314 = vrot.slane %v2309, %v2313
    %v2315 = vlaneseq
    %v2316 = vshrl.u32 %v2315, 7
    %v2317 = vsub.s32 3, %v2316
    %v2318 = vrot.slane %v2309, %v2317
    %v2319 = vlaneseq
    %v2320 = vshrl.u32 %v2319, 7
    %v2321 = vsub.s32 5, %v2320
    %v2322 = vrot.slane %v2309, %v2321
    %v2323 = vlaneseq
    %v2324 = vshrl.u32 %v2323, 7
    %v2325 = vsub.s32 7, %v2324
    %v2326 = vrot.slane %v2309, %v2325
    %2331 = vmatprep.subr.bf16.mxu0 %v1246
    %2332 = vmatpush1.bf16.msra.mxu0 %v1245
    %2333 = vmatprep.subr.bf16.mxu0 %v1254
    %2334 = vmatpush1.bf16.msra.mxu0 %v1253
    %2335 = vmatprep.subr.bf16.mxu0 %v1262
    %2336 = vmatpush1.bf16.msra.mxu0 %v1261
    %2337 = vmatprep.subr.bf16.mxu0 %v1270
    %2338 = vmatpush1.bf16.msra.mxu0 %v1269
    %2339 = vmatprep.subr.bf16.mxu0 %v1278
    %2340 = vmatpush1.bf16.msra.mxu0 %v1277
    %2341 = vmatprep.subr.bf16.mxu0 %v1286
    %2342 = vmatpush1.bf16.msra.mxu0 %v1285
    %2343 = vmatprep.subr.bf16.mxu0 %v1294
    %2344 = vmatpush1.bf16.msra.mxu0 %v1293
    %2345 = vmatprep.subr.bf16.mxu0 %v1302
    %2346 = vmatpush1.bf16.msra.mxu0 %v1301
    %2347 = vmatprep.subr.bf16.mxu0 %v1310
    %2348 = vmatpush1.bf16.msra.mxu0 %v1309
    %2349 = vmatprep.subr.bf16.mxu0 %v1318
    %2350 = vmatpush1.bf16.msra.mxu0 %v1317
    %2351 = vmatprep.subr.bf16.mxu0 %v1326
    %2352 = vmatpush1.bf16.msra.mxu0 %v1325
    %2353 = vmatprep.subr.bf16.mxu0 %v1334
    %2354 = vmatpush1.bf16.msra.mxu0 %v1333
    %2355 = vmatprep.subr.bf16.mxu0 %v1342
    %2356 = vmatpush1.bf16.msra.mxu0 %v1341
    %2357 = vmatprep.subr.bf16.mxu0 %v1350
    %2358 = vmatpush1.bf16.msra.mxu0 %v1349
    %2359 = vmatprep.subr.bf16.mxu0 %v1358
    %2360 = vmatpush1.bf16.msra.mxu0 %v1357
    %2361 = vmatprep.subr.bf16.mxu0 %v1366
    %2362 = vmatpush1.bf16.msra.mxu0 %v1365
    %2363 = vmatprep.mubr.bf16.mxu0 %v2291
    %2364 = vmatmul.mubr.bf16.gmra.mrb[0].mxu0 %v2308
    %v2365 = vpop.f32.mrb[0].mxu0
    %v2366 = vpop.f32.mrb[0].mxu0
    %v2367 = vadd.f32 %v2314, %v2366
    %v2368 = vpop.f32.mrb[0].mxu0
    %v2369 = vpop.f32.mrb[0].mxu0
    %2370 = vdwg.mxu0
    %2371 = vmatprep.subr.bf16.mxu0 %v1248
    %2372 = vmatpush1.bf16.msra.mxu0 %v1247
    %2373 = vmatprep.subr.bf16.mxu0 %v1256
    %2374 = vmatpush1.bf16.msra.mxu0 %v1255
    %2375 = vmatprep.subr.bf16.mxu0 %v1264
    %2376 = vmatpush1.bf16.msra.mxu0 %v1263
    %2377 = vmatprep.subr.bf16.mxu0 %v1272
    %2378 = vmatpush1.bf16.msra.mxu0 %v1271
    %2379 = vmatprep.subr.bf16.mxu0 %v1280
    %2380 = vmatpush1.bf16.msra.mxu0 %v1279
    %2381 = vmatprep.subr.bf16.mxu0 %v1288
    %2382 = vmatpush1.bf16.msra.mxu0 %v1287
    %2383 = vmatprep.subr.bf16.mxu0 %v1296
    %2384 = vmatpush1.bf16.msra.mxu0 %v1295
    %2385 = vmatprep.subr.bf16.mxu0 %v1304
    %2386 = vmatpush1.bf16.msra.mxu0 %v1303
    %2387 = vmatprep.subr.bf16.mxu0 %v1312
    %2388 = vmatpush1.bf16.msra.mxu0 %v1311
    %2389 = vmatprep.subr.bf16.mxu0 %v1320
    %2390 = vmatpush1.bf16.msra.mxu0 %v1319
    %2391 = vmatprep.subr.bf16.mxu0 %v1328
    %2392 = vmatpush1.bf16.msra.mxu0 %v1327
    %2393 = vmatprep.subr.bf16.mxu0 %v1336
    %2394 = vmatpush1.bf16.msra.mxu0 %v1335
    %2395 = vmatprep.subr.bf16.mxu0 %v1344
    %2396 = vmatpush1.bf16.msra.mxu0 %v1343
    %2397 = vmatprep.subr.bf16.mxu0 %v1352
    %2398 = vmatpush1.bf16.msra.mxu0 %v1351
    %2399 = vmatprep.subr.bf16.mxu0 %v1360
    %2400 = vmatpush1.bf16.msra.mxu0 %v1359
    %2401 = vmatprep.subr.bf16.mxu0 %v1368
    %2402 = vmatpush1.bf16.msra.mxu0 %v1367
    %2403 = vmatprep.mubr.bf16.mxu0 %v2291
    %2404 = vmatmul.mubr.bf16.gmra.mrb[0].mxu0 %v2308
    %v2405 = vpop.f32.mrb[0].mxu0
    %v2406 = vpop.f32.mrb[0].mxu0
    %v2407 = vadd.f32 %v2318, %v2406
    %v2408 = vpop.f32.mrb[0].mxu0
    %v2409 = vpop.f32.mrb[0].mxu0
    %2410 = vdwg.mxu0
    %2411 = vmatprep.subr.bf16.mxu0 %v1250
    %2412 = vmatpush1.bf16.msra.mxu0 %v1249
    %2413 = vmatprep.subr.bf16.mxu0 %v1258
    %2414 = vmatpush1.bf16.msra.mxu0 %v1257
    %2415 = vmatprep.subr.bf16.mxu0 %v1266
    %2416 = vmatpush1.bf16.msra.mxu0 %v1265
    %2417 = vmatprep.subr.bf16.mxu0 %v1274
    %2418 = vmatpush1.bf16.msra.mxu0 %v1273
    %2419 = vmatprep.subr.bf16.mxu0 %v1282
    %2420 = vmatpush1.bf16.msra.mxu0 %v1281
    %2421 = vmatprep.subr.bf16.mxu0 %v1290
    %2422 = vmatpush1.bf16.msra.mxu0 %v1289
    %2423 = vmatprep.subr.bf16.mxu0 %v1298
    %2424 = vmatpush1.bf16.msra.mxu0 %v1297
    %2425 = vmatprep.subr.bf16.mxu0 %v1306
    %2426 = vmatpush1.bf16.msra.mxu0 %v1305
    %2427 = vmatprep.subr.bf16.mxu0 %v1314
    %2428 = vmatpush1.bf16.msra.mxu0 %v1313
    %2429 = vmatprep.subr.bf16.mxu0 %v1322
    %2430 = vmatpush1.bf16.msra.mxu0 %v1321
    %2431 = vmatprep.subr.bf16.mxu0 %v1330
    %2432 = vmatpush1.bf16.msra.mxu0 %v1329
    %2433 = vmatprep.subr.bf16.mxu0 %v1338
    %2434 = vmatpush1.bf16.msra.mxu0 %v1337
    %2435 = vmatprep.subr.bf16.mxu0 %v1346
    %2436 = vmatpush1.bf16.msra.mxu0 %v1345
    %2437 = vmatprep.subr.bf16.mxu0 %v1354
    %2438 = vmatpush1.bf16.msra.mxu0 %v1353
    %2439 = vmatprep.subr.bf16.mxu0 %v1362
    %2440 = vmatpush1.bf16.msra.mxu0 %v1361
    %2441 = vmatprep.subr.bf16.mxu0 %v1370
    %2442 = vmatpush1.bf16.msra.mxu0 %v1369
    %2443 = vmatprep.mubr.bf16.mxu0 %v2291
    %2444 = vmatmul.mubr.bf16.gmra.mrb[0].mxu0 %v2308
    %v2445 = vpop.f32.mrb[0].mxu0
    %v2446 = vpop.f32.mrb[0].mxu0
    %v2447 = vadd.f32 %v2322, %v2446
    %v2448 = vpop.f32.mrb[0].mxu0
    %v2449 = vpop.f32.mrb[0].mxu0
    %2450 = vdwg.mxu0
    %2451 = vmatprep.subr.bf16.mxu0 %v1252
    %2452 = vmatpush1.bf16.msra.mxu0 %v1251
    %2453 = vmatprep.subr.bf16.mxu0 %v1260
    %2454 = vmatpush1.bf16.msra.mxu0 %v1259
    %2455 = vmatprep.subr.bf16.mxu0 %v1268
    %2456 = vmatpush1.bf16.msra.mxu0 %v1267
    %2457 = vmatprep.subr.bf16.mxu0 %v1276
    %2458 = vmatpush1.bf16.msra.mxu0 %v1275
    %2459 = vmatprep.subr.bf16.mxu0 %v1284
    %2460 = vmatpush1.bf16.msra.mxu0 %v1283
    %2461 = vmatprep.subr.bf16.mxu0 %v1292
    %2462 = vmatpush1.bf16.msra.mxu0 %v1291
    %2463 = vmatprep.subr.bf16.mxu0 %v1300
    %2464 = vmatpush1.bf16.msra.mxu0 %v1299
    %2465 = vmatprep.subr.bf16.mxu0 %v1308
    %2466 = vmatpush1.bf16.msra.mxu0 %v1307
    %2467 = vmatprep.subr.bf16.mxu0 %v1316
    %2468 = vmatpush1.bf16.msra.mxu0 %v1315
    %2469 = vmatprep.subr.bf16.mxu0 %v1324
    %2470 = vmatpush1.bf16.msra.mxu0 %v1323
    %2471 = vmatprep.subr.bf16.mxu0 %v1332
    %2472 = vmatpush1.bf16.msra.mxu0 %v1331
    %2473 = vmatprep.subr.bf16.mxu0 %v1340
    %2474 = vmatpush1.bf16.msra.mxu0 %v1339
    %2475 = vmatprep.subr.bf16.mxu0 %v1348
    %2476 = vmatpush1.bf16.msra.mxu0 %v1347
    %2477 = vmatprep.subr.bf16.mxu0 %v1356
    %2478 = vmatpush1.bf16.msra.mxu0 %v1355
    %2479 = vmatprep.subr.bf16.mxu0 %v1364
    %2480 = vmatpush1.bf16.msra.mxu0 %v1363
    %2481 = vmatprep.subr.bf16.mxu0 %v1372
    %2482 = vmatpush1.bf16.msra.mxu0 %v1371
    %2483 = vmatprep.mubr.bf16.mxu0 %v2291
    %2484 = vmatmul.mubr.bf16.gmra.mrb[0].mxu0 %v2308
    %v2485 = vpop.f32.mrb[0].mxu0
    %v2486 = vpop.f32.mrb[0].mxu0
    %v2487 = vadd.f32 %v2326, %v2486
    %v2488 = vpop.f32.mrb[0].mxu0
    %v2489 = vpop.f32.mrb[0].mxu0
    %2490 = vdwg.mxu0
    %v2491 = vxor.u32 %v2367, 2147483648
    %v2492 = vmul.f32 %v2491, 1.442695
    %v2493 = vpow.pop %v2492
    %v2494 = vadd.f32 %v2493, 1.0
    %v2495 = vrcp.pop %v2494
    %v2496 = vmul.f32 1.0, %v2495
    %v2497 = vxor.u32 %v2407, 2147483648
    %v2498 = vmul.f32 %v2497, 1.442695
    %v2499 = vpow.pop %v2498
    %v2500 = vadd.f32 %v2499, 1.0
    %v2501 = vrcp.pop %v2500
    %v2502 = vmul.f32 1.0, %v2501
    %v2503 = vtanh.pop %v2447
    %v2504 = vxor.u32 %v2487, 2147483648
    %v2505 = vmul.f32 %v2504, 1.442695
    %v2506 = vpow.pop %v2505
    %v2507 = vadd.f32 %v2506, 1.0
    %v2508 = vrcp.pop %v2507
    %v2509 = vmul.f32 1.0, %v2508
    %v2510 = vmul.f32 %v2502, %v2286
    %v2511 = vmul.f32 %v2496, %v2503
    %v2512 = vadd.f32 %v2510, %v2511
    %v2513 = vtanh.pop %v2512
    %v2514 = vmul.f32 %v2509, %v2513
    %v2515 = vpack.c.bf16 %v2514, %v2514
    %v2518 = vunpack.c.l.s4 1983009808
    %v2519 = vunpack.c.0.s8 %v2518
    %v2520 = vlaneseq
    %v2521 = vshrl.u32 %v2520, 7
    %v2522 = vsub.s32 %v2519, %v2521
    %v2523 = vrot.slane %v2515, %v2522
    %v2525 = vshll.u32 %v2523, 16
    %v2527 = vrot.slane %v2525, 7
    %vm2529 = vsmask.f32 7942
    %vm2530 = vmand %vm2302, %vm2529
    %v2531 = vld [vmem:[#allocation3] sm:$0x2]
    %v2532 = vsel %vm2530, %v2527, %v2531
    %2533 = vst [vmem:[#allocation3] sm:$0x2] %v2532
    %s2534 = smul.u32 4, 16
    %s2535 = smul.u32 %s2534, 1
    %s2536 = sshll.u32 %s2535, 4
    %2537 = dma.done [#allocation5], %s2536
    %v2538 = vld [vmem:[#allocation3] sm:$0x3]
    %v2539 = vld [vmem:[#allocation4] sm:$0xff]
    %v2540 = vld [vmem:[#allocation4 + $0x8] sm:$0xff]
    %v2541 = vld [vmem:[#allocation4 + $0x10] sm:$0xff]
    %v2542 = vld [vmem:[#allocation4 + $0x18] sm:$0xff]
    %v2543 = vld [vmem:[#allocation4 + $0x20] sm:$0xff]
    %v2544 = vld [vmem:[#allocation4 + $0x28] sm:$0xff]
    %v2545 = vld [vmem:[#allocation4 + $0x30] sm:$0xff]
    %v2546 = vld [vmem:[#allocation4 + $0x38] sm:$0xff]
    %v2547 = vld [vmem:[%s5] sm:$0x1]
    %v2549 = vlaneseq
    %v2550 = vshrl.u32 %v2549, 7
    %v2551 = vsub.s32 0, %v2550
    %v2552 = vrot.slane %v2547, %v2551
    %2554 = vmatprep.subr.bf16.mxu0 0
    %2555 = vmatpush1.bf16.msra.mxu0 %v2539
    %2556 = vmatprep.subr.bf16.mxu0 0
    %2557 = vmatpush1.bf16.msra.mxu0 %v2540
    %2558 = vmatprep.subr.bf16.mxu0 0
    %2559 = vmatpush1.bf16.msra.mxu0 %v2541
    %2560 = vmatprep.subr.bf16.mxu0 0
    %2561 = vmatpush1.bf16.msra.mxu0 %v2542
    %2562 = vmatprep.subr.bf16.mxu0 0
    %2563 = vmatpush1.bf16.msra.mxu0 %v2543
    %2564 = vmatprep.subr.bf16.mxu0 0
    %2565 = vmatpush1.bf16.msra.mxu0 %v2544
    %2566 = vmatprep.subr.bf16.mxu0 0
    %2567 = vmatpush1.bf16.msra.mxu0 %v2545
    %2568 = vmatprep.subr.bf16.mxu0 0
    %2569 = vmatpush1.bf16.msra.mxu0 %v2546
    %2570 = vmatprep.subr.bf16.mxu0 0
    %2571 = vmatpush1.bf16.msra.mxu0 0
    %2572 = vmatprep.subr.bf16.mxu0 0
    %2573 = vmatpush1.bf16.msra.mxu0 0
    %2574 = vmatprep.subr.bf16.mxu0 0
    %2575 = vmatpush1.bf16.msra.mxu0 0
    %2576 = vmatprep.subr.bf16.mxu0 0
    %2577 = vmatpush1.bf16.msra.mxu0 0
    %2578 = vmatprep.subr.bf16.mxu0 0
    %2579 = vmatpush1.bf16.msra.mxu0 0
    %2580 = vmatprep.subr.bf16.mxu0 0
    %2581 = vmatpush1.bf16.msra.mxu0 0
    %2582 = vmatprep.subr.bf16.mxu0 0
    %2583 = vmatpush1.bf16.msra.mxu0 0
    %2584 = vmatprep.subr.bf16.mxu0 0
    %2585 = vmatpush1.bf16.msra.mxu0 0
    %2586 = vmatprep.mubr.bf16.mxu0 0
    %2587 = vmatmul.mubr.bf16.gmra.mrb[0].mxu0 %v2538
    %v2588 = vpop.f32.mrb[0].mxu0
    %v2589 = vadd.f32 %v2552, %v2588
    %v2590 = vpop.f32.mrb[0].mxu0
    %v2591 = vpop.f32.mrb[0].mxu0
    %v2592 = vpop.f32.mrb[0].mxu0
    %2593 = vdwg.mxu0
    %2594 = vst [vmem:[#allocation14] sm:$0xf] %v2589
    // Predicated region
    $region42: #{tpu_custom_call.1} parent=1 // pred_check
      _
    $region43: #{tpu_custom_call.1} parent=1 // pred_check_branch
      %2596 = sbr.rel (0) target = $region45
    $region44: #{tpu_custom_call.1} parent=1 // pred_region
      %s2598 = ssub.s32 64, 64
      %2599 = vsyncadd [#allocation8], %s2598
      %s2601 = sshll.u32 [#allocation14], 4
      %s2602 = int_to_ptr.vmem [resolvable:$true] %s2601
      %2604 = dma.vmem_to_hbm [thread:$0]  %s2602, 64, %s6, [#allocation8]
    $region45: #{tpu_custom_call.1} parent=1 // pred_fallthru
      _
    // Predicated region
    $region46: #{tpu_custom_call.1} parent=1 // pred_check
      _
    $region47: #{tpu_custom_call.1} parent=1 // pred_check_branch
      %2606 = sbr.rel (0) target = $region49
    $region48: #{tpu_custom_call.1} parent=1 // pred_region
      %2607 = dma.done [#allocation8], 64
    $region49: #{tpu_custom_call.1} parent=1 // pred_fallthru
      _
    %2608 = vsyncpa [#allocation7], 1
    %2609 = vsyncpa [#allocation10], 1
    %2610 = vsyncpa [#allocation13], 1
    %2611 = vsyncpa [#allocation8], 1
  %2612 = vsyncmov [#allocation5]
  %s2613 = vpop.sfrf %2612
  %p2614 = scmp.eq.s32.totalorder %s2613, 0
  %p2615 = pneg %p2614
  %2617 = shalt.err (%p2615)

</llo_original>
